<compile_context>
chip_gen: v7x
topology: tpu7x:2x2x1
jax: 0.10.0
libtpu: 0.0.40
codegen_flags: <defaults>
</compile_context>

<pallas_src>
import functools

import jax
import jax.numpy as jnp
from jax.experimental import pallas as pl
from jax.experimental.pallas import tpu as pltpu

_VMEM = pl.BlockSpec(memory_space=pltpu.MemorySpace.VMEM)
_MXU_DTYPE = jnp.bfloat16                     # matmul-operand dtype (f32 accum)
# BatchNorm1d eval with default running stats (mean=0, var=1, gamma=1, beta=0).
# With trained weights, fold the real stats/affine into wc/bc and w2 the same
# way this scalar is folded in init_params().
_BN_EVAL_SCALE = (1.0 + 1e-5) ** -0.5


# --------------- kernel 1: GRU input-gate projection (hoisted) ---------------

def _gru_xproj_kernel(emb_ref, w_ref, b_ref, o_ref):
    x = jnp.tanh(emb_ref[...])                               # tanh(drop(embedded))
    o_ref[...] = (jnp.dot(x.astype(_MXU_DTYPE), w_ref[...],
                          preferred_element_type=jnp.float32)
                  + b_ref[...]).astype(o_ref.dtype)


def gru_input_proj(emb_flat, w_ih_cat, b_ih_cat):
    # NOTE: at production T*B this should get a row-tile grid; tiny here.
    TB, _ = emb_flat.shape
    H3 = w_ih_cat.shape[1]
    return pl.pallas_call(
        _gru_xproj_kernel,
        out_shape=jax.ShapeDtypeStruct((TB, H3), jnp.float32),
        in_specs=[_VMEM, _VMEM, _VMEM],
        out_specs=_VMEM,
        compiler_params=pltpu.CompilerParams(vmem_limit_bytes=32 * 1024 * 1024),
    )(emb_flat, w_ih_cat, b_ih_cat)


# --------------- kernel 2: GRU recurrence (Tc timesteps / grid step) ---------

def _gru_rec_kernel(xp_ref, whh_ref, bhh_ref, len_ref, h_ref):
    tb = pl.program_id(1)

    @pl.when(tb == 0)
    def _():
        h_ref[...] = jnp.zeros_like(h_ref)

    tc = xp_ref.shape[0]
    H = h_ref.shape[-1]
    lens = len_ref[...]                                      # (Bb, 1) int32
    t0 = tb * tc

    def step(i, h):
        xp = xp_ref[i]                                       # (Bb, 3H) f32
        # single fused (H, 3H) hidden-gate matmul, bf16 operands, f32 accum
        hp = (jnp.dot(h.astype(_MXU_DTYPE), whh_ref[...],
                      preferred_element_type=jnp.float32) + bhh_ref[...])
        # PyTorch GRU gate order: r, z, n (128-lane-aligned slices at H=128*k)
        r = jax.nn.sigmoid(xp[:, 0:H] + hp[:, 0:H])
        z = jax.nn.sigmoid(xp[:, H:2 * H] + hp[:, H:2 * H])
        n = jnp.tanh(xp[:, 2 * H:3 * H] + r * hp[:, 2 * H:3 * H])
        h_new = (1.0 - z) * n + z * h
        mask = (t0 + i) < lens                               # packed-sequence
        return jnp.where(mask, h_new, h)

    h_ref[...] = jax.lax.fori_loop(0, tc, step, h_ref[...], unroll=True)


def gru_recurrence(xp_tbh, w_hh_cat, b_hh_cat, lengths, *, tc=4):
    T, B, H3 = xp_tbh.shape
    H = H3 // 3
    t_pad = ((T + tc - 1) // tc) * tc
    if t_pad != T:                                           # padded steps masked
        xp_tbh = jnp.pad(xp_tbh, ((0, t_pad - T), (0, 0), (0, 0)))
    lens = lengths.reshape(B, 1).astype(jnp.int32)
    bb = B                     # one batch block here; B//2 blocks on v7x megacore
    nb, nt = B // bb, t_pad // tc
    return pl.pallas_call(
        _gru_rec_kernel,
        out_shape=jax.ShapeDtypeStruct((B, H), jnp.float32),
        grid_spec=pltpu.PrefetchScalarGridSpec(
            num_scalar_prefetch=0,
            grid=(nb, nt),
            in_specs=[
                pl.BlockSpec((tc, bb, H3), lambda b, t: (t, b, 0)),  # stream slab
                pl.BlockSpec((H, H3), lambda b, t: (0, 0)),          # resident W_hh
                pl.BlockSpec((1, H3), lambda b, t: (0, 0)),
                pl.BlockSpec((bb, 1), lambda b, t: (b, 0)),
            ],
            out_specs=pl.BlockSpec((bb, H), lambda b, t: (b, 0)),    # resident carry
        ),
        compiler_params=pltpu.CompilerParams(
            dimension_semantics=("parallel", "arbitrary"),
            vmem_limit_bytes=32 * 1024 * 1024),
    )(xp_tbh, w_hh_cat, b_hh_cat, lens)


# ------- kernel 3: fused L2 norm + attention + softmax pooling (no .T) -------

def _attention_pool_kernel(v_ref, qp_ref, wv_ref, wx_ref, bx_ref, o_ref):
    # feature-major throughout: v_cs is (Cv, S); channel L2 norm is a sublane
    # reduce; the per-position divide is replaced by a reciprocal multiply.
    v_cs = v_ref[0]                                              # (Cv, S) f32
    nrm = jnp.sqrt(jnp.sum(v_cs * v_cs, axis=0, keepdims=True))  # (1, S)
    v_n = v_cs * pl.reciprocal(nrm + 1e-12)                      # v/(||v||+1e-12)
    v_mx = v_n.astype(_MXU_DTYPE)

    qp = qp_ref[0]                                               # (Ma, 1) q_lin row
    vp = jnp.dot(wv_ref[...], v_mx,
                 preferred_element_type=jnp.float32)             # (Ma, S) v_conv
    f = -(vp - qp) ** 2 + jnp.maximum(vp + qp, 0.0)              # Fusion.forward
    logits = (jnp.dot(wx_ref[...], f.astype(_MXU_DTYPE),
                      preferred_element_type=jnp.float32)
              + bx_ref[...])                                     # (G, S) x_conv

    # softmax over spatial + glimpse pooling (apply_attention)
    m = jnp.max(logits, axis=-1, keepdims=True)
    p = jnp.exp(logits - m)
    att = p * pl.reciprocal(jnp.sum(p, axis=-1, keepdims=True))  # (G, S)

    pooled = jax.lax.dot_general(                                # (G, Cv) = att @ v^T
        att.astype(_MXU_DTYPE), v_mx,
        dimension_numbers=(((1,), (1,)), ((), ())),
        preferred_element_type=jnp.float32)
    o_ref[...] = pooled[None].astype(o_ref.dtype)


def attention_pool(v_ncs, qp, wv, wx, bx):
    B, Cv, S = v_ncs.shape
    Ma = wv.shape[0]
    G = wx.shape[0]
    return pl.pallas_call(
        _attention_pool_kernel,
        out_shape=jax.ShapeDtypeStruct((B, G, Cv), jnp.float32),
        grid_spec=pltpu.PrefetchScalarGridSpec(
            num_scalar_prefetch=0,
            grid=(B,),
            in_specs=[
                pl.BlockSpec((1, Cv, S), lambda b: (b, 0, 0)),   # this batch's map
                pl.BlockSpec((1, Ma, 1), lambda b: (b, 0, 0)),   # hoisted q_lin row
                pl.BlockSpec((Ma, Cv), lambda b: (0, 0)),        # resident weights
                pl.BlockSpec((G, Ma), lambda b: (0, 0)),
                pl.BlockSpec((G, 1), lambda b: (0, 0)),
            ],
            out_specs=pl.BlockSpec((1, G, Cv), lambda b: (b, 0, 0)),
        ),
        compiler_params=pltpu.CompilerParams(
            dimension_semantics=("parallel",),                   # megacore split
            vmem_limit_bytes=32 * 1024 * 1024),
    )(v_ncs, qp, wv, wx, bx)


# -------------------- kernel 4: fused classifier tail (B grid) ---------------

def _classifier_kernel(v_ref, q_ref, c_ref, w11_ref, b11_ref, w12_ref, b12_ref,
                       wc_ref, bc_ref, w2_ref, b2_ref, o_ref):
    x1 = (jnp.dot(v_ref[...].astype(_MXU_DTYPE), w11_ref[...],
                  preferred_element_type=jnp.float32) + b11_ref[...])
    x2 = (jnp.dot(q_ref[...].astype(_MXU_DTYPE), w12_ref[...],
                  preferred_element_type=jnp.float32) + b12_ref[...])
    xf = -(x1 - x2) ** 2 + jnp.maximum(x1 + x2, 0.0)             # Fusion
    xc = jnp.maximum(
        jnp.dot(c_ref[...].astype(_MXU_DTYPE), wc_ref[...],
                preferred_element_type=jnp.float32) + bc_ref[...], 0.0)
    # BN eval scales are pre-folded into wc/bc (bn2) and w2 (bn) at init time.
    y = (jnp.dot((xf + xc).astype(_MXU_DTYPE), w2_ref[...],
                 preferred_element_type=jnp.float32) + b2_ref[...])
    o_ref[...] = y.astype(o_ref.dtype)


def classifier(v_att, q, count, w11, b11, w12, b12, wc, bc, w2, b2):
    B, VA = v_att.shape
    Hq = q.shape[1]
    Cc = count.shape[1]
    Mc = w11.shape[1]
    Ap = w2.shape[1]                                             # 128-padded answers
    tb = min(B, 256)                                             # batch tile
    return pl.pallas_call(
        _classifier_kernel,
        out_shape=jax.ShapeDtypeStruct((B, Ap), jnp.float32),
        grid=(pl.cdiv(B, tb),),
        in_specs=[
            pl.BlockSpec((tb, VA), lambda i: (i, 0)),
            pl.BlockSpec((tb, Hq), lambda i: (i, 0)),
            pl.BlockSpec((tb, Cc), lambda i: (i, 0)),
            pl.BlockSpec((VA, Mc), lambda i: (0, 0)),            # resident weights
            pl.BlockSpec((1, Mc), lambda i: (0, 0)),
            pl.BlockSpec((Hq, Mc), lambda i: (0, 0)),
            pl.BlockSpec((1, Mc), lambda i: (0, 0)),
            pl.BlockSpec((Cc, Mc), lambda i: (0, 0)),
            pl.BlockSpec((1, Mc), lambda i: (0, 0)),
            pl.BlockSpec((Mc, Ap), lambda i: (0, 0)),
            pl.BlockSpec((1, Ap), lambda i: (0, 0)),
        ],
        out_specs=pl.BlockSpec((tb, Ap), lambda i: (i, 0)),
        compiler_params=pltpu.CompilerParams(
            dimension_semantics=("parallel",),
            vmem_limit_bytes=48 * 1024 * 1024),                  # <= v7x 64 MiB
    )(v_att, q, count, w11, b11, w12, b12, wc, bc, w2, b2)


# ------------------------------ parameters -----------------------------------

def init_params(key, cfg):
    E = cfg["embedding_features"]
    Hq = cfg["question_features"]
    Cv = cfg["vision_features"]
    Ma = cfg["attn_mid"]
    Mc = cfg["cls_mid"]
    G = cfg["glimpses"]
    A = cfg["max_answers"]
    A_pad = ((A + 127) // 128) * 128                             # lane-dense lin2
    nobj = cfg["objects"]

    keys = jax.random.split(key, 16)

    def xavier(k, shape, fan_in, fan_out):
        lim = (6.0 / (fan_in + fan_out)) ** 0.5
        return jax.random.uniform(k, shape, jnp.float32, -lim, lim)

    emb = xavier(keys[0], (cfg["embedding_tokens"], E), cfg["embedding_tokens"], E)
    emb = emb.at[0].set(0.0)  # padding_idx=0

    # GRU weights stored gate-concatenated along the output dim (r, z, n);
    # biases are zeroed in TextProcessor.__init__.
    w_ih = jnp.concatenate([xavier(keys[1 + g], (E, Hq), E, Hq)
                            for g in range(3)], axis=1)          # (E, 3H)
    w_hh = jnp.concatenate([xavier(keys[4 + g], (Hq, Hq), Hq, Hq)
                            for g in range(3)], axis=1)          # (H, 3H)

    s = _BN_EVAL_SCALE
    w2 = xavier(keys[13], (Mc, A), Mc, A)
    w2 = jnp.pad(w2, ((0, 0), (0, A_pad - A)))                   # pad to 128 lanes

    return dict(
        emb=emb,
        w_ih=w_ih, b_ih=jnp.zeros((1, 3 * Hq), jnp.float32),
        w_hh=w_hh, b_hh=jnp.zeros((1, 3 * Hq), jnp.float32),
        # Attention: v_conv (1x1, no bias, (out,in) layout), q_lin, x_conv
        att_v_w=xavier(keys[7], (Ma, Cv), Cv, Ma),
        att_q_w=xavier(keys[8], (Hq, Ma), Hq, Ma),
        att_q_b=jnp.zeros((1, Ma), jnp.float32),
        att_x_w=xavier(keys[9], (G, Ma), Ma, G),
        att_x_b=jnp.zeros((G, 1), jnp.float32),
        # Classifier (bn2 eval scale folded into lin_c, bn eval scale into lin2)
        lin11_w=xavier(keys[10], (G * Cv, Mc), G * Cv, Mc),
        lin11_b=jnp.zeros((1, Mc), jnp.float32),
        lin12_w=xavier(keys[11], (Hq, Mc), Hq, Mc),
        lin12_b=jnp.zeros((1, Mc), jnp.float32),
        linc_w=xavier(keys[12], (nobj + 1, Mc), nobj + 1, Mc) * s,
        linc_b=jnp.zeros((1, Mc), jnp.float32) * s,
        lin2_w=w2 * s,
        lin2_b=jnp.zeros((1, A_pad), jnp.float32),
    )


# ------------------------------ Net.forward ----------------------------------

def net_forward(params, cfg, v, boxes, q_ids, q_len):
    del boxes  # only consumed by the (stubbed) counter
    B, Cv, H, W = v.shape
    S = H * W
    G = cfg["glimpses"]
    A = cfg["max_answers"]

    # ---- TextProcessor: gather straight into (T,B,E), hoisted input proj ----
    emb_tbe = jnp.take(params["emb"], q_ids.T, axis=0)           # (T, B, E)
    T, _, E = emb_tbe.shape
    xp = gru_input_proj(emb_tbe.reshape(T * B, E),
                        params["w_ih"].astype(_MXU_DTYPE), params["b_ih"])
    q = gru_recurrence(xp.reshape(T, B, -1),
                       params["w_hh"].astype(_MXU_DTYPE), params["b_hh"],
                       q_len, tc=4)                              # (B, Hq)

    # ---- Attention: q_lin hoisted out of the per-batch grid (tiny matmul) ----
    qp = (jnp.dot(q, params["att_q_w"]) + params["att_q_b"])[:, :, None]  # (B,Ma,1)
    v_ncs = v.reshape(B, Cv, S)                                  # free NCHW -> N,C,S
    v_att = attention_pool(v_ncs, qp,
                           params["att_v_w"].astype(_MXU_DTYPE),
                           params["att_x_w"].astype(_MXU_DTYPE),
                           params["att_x_b"])                    # (B, G, Cv)
    v_att = v_att.reshape(B, G * Cv)                             # glimpse-major

    # TODO(synk): counting.Counter is an external module not provided in the
    # source; substituting zero count features of shape (B, objects + 1).
    count = jnp.zeros((B, cfg["objects"] + 1), jnp.float32)

    # ---- fused classifier tail (dropout identity; BN eval scales folded) ----
    out = classifier(
        v_att, q, count,
        params["lin11_w"].astype(_MXU_DTYPE), params["lin11_b"],
        params["lin12_w"].astype(_MXU_DTYPE), params["lin12_b"],
        params["linc_w"].astype(_MXU_DTYPE), params["linc_b"],
        params["lin2_w"].astype(_MXU_DTYPE), params["lin2_b"])
    return out[:, :A]                                            # drop lane padding


# --------------------------------- main ---------------------------------------

if __name__ == "__main__":
    # Small shapes consistent with the module structure (features scaled down;
    # question/vision/cls features kept at 128 so gate slices stay lane-aligned).
    cfg = dict(
        embedding_tokens=50,
        embedding_features=32,   # nn.Embedding features (orig 300)
        question_features=128,   # GRU hidden / q features (orig 1024)
        vision_features=128,     # config.output_features (orig e.g. 2048)
        attn_mid=32,             # Attention mid_features (orig 512)
        cls_mid=128,             # Classifier mid_features (orig 1024)
        glimpses=2,
        objects=10,              # count_features = objects + 1
        max_answers=16,          # config.max_answers (padded to 128 internally)
    )
    B, Hsp, Wsp, T = 2, 4, 4, 6

    params = init_params(jax.random.PRNGKey(0), cfg)

    k1, k2, k3 = jax.random.split(jax.random.PRNGKey(0), 3)
    v = jax.random.normal(k1, (B, cfg["vision_features"], Hsp, Wsp), jnp.float32)
    boxes = jax.random.normal(k2, (B, 4, Hsp * Wsp), jnp.float32)  # unused (counter stubbed)
    q_ids = jax.random.randint(k3, (B, T), 1, cfg["embedding_tokens"]).astype(jnp.int32)
    q_len = jnp.array([T, T - 2], jnp.int32)

    fwd = jax.jit(functools.partial(net_forward, params, cfg))
    out = fwd(v, boxes, q_ids, q_len)
    jax.block_until_ready(out)
    assert out.shape == (B, cfg["max_answers"]) and out.dtype == jnp.float32
    print("KERNEL_OK")
</pallas_src>

<mosaic_0001>
module attributes {stable_mosaic.version = 11 : i64} {
  func.func @_gru_xproj_kernel(%arg0: memref<12x32xf32, #tpu.memory_space<vmem>>, %arg1: memref<32x384xbf16, #tpu.memory_space<vmem>>, %arg2: memref<1x384xf32, #tpu.memory_space<vmem>>, %arg3: memref<12x384xf32, #tpu.memory_space<vmem>>) attributes {dimension_semantics = [], scalar_prefetch = 0 : i64, scratch_operands = 0 : i64, tpu.core_type = #tpu.core_type<tc>} {
    %c0 = arith.constant 0 : index
    %c0_0 = arith.constant 0 : index
    %0 = vector.load %arg0[%c0, %c0_0] : memref<12x32xf32, #tpu.memory_space<vmem>>, vector<12x32xf32>
    %1 = math.tanh %0 : vector<12x32xf32>
    %2 = arith.truncf %1 : vector<12x32xf32> to vector<12x32xbf16>
    %c0_1 = arith.constant 0 : index
    %c0_2 = arith.constant 0 : index
    %3 = vector.load %arg1[%c0_1, %c0_2] : memref<32x384xbf16, #tpu.memory_space<vmem>>, vector<32x384xbf16>
    %cst = arith.constant dense<0.000000e+00> : vector<12x384xf32>
    %4 = tpu.matmul %2, %3, %cst {dimension_numbers = #tpu.dot_dimension_numbers<[1], [0], [0], [1], [0, 0, 1, 1], [], []>} : vector<12x32xbf16>, vector<32x384xbf16>, vector<12x384xf32> -> vector<12x384xf32>
    %c0_3 = arith.constant 0 : index
    %c0_4 = arith.constant 0 : index
    %5 = vector.load %arg2[%c0_3, %c0_4] : memref<1x384xf32, #tpu.memory_space<vmem>>, vector<1x384xf32>
    %6 = vector.broadcast %5 : vector<1x384xf32> to vector<12x384xf32>
    %7 = arith.addf %4, %6 : vector<12x384xf32>
    %c0_5 = arith.constant 0 : index
    %c0_6 = arith.constant 0 : index
    %8 = vector.load %arg3[%c0_5, %c0_6] : memref<12x384xf32, #tpu.memory_space<vmem>>, vector<12x384xf32>
    tpu.vector_store %arg3[%c0_5, %c0_6], %7 {strides = array<i32>} : memref<12x384xf32, #tpu.memory_space<vmem>>, vector<12x384xf32>,
    return
  }
}

module attributes {stable_mosaic.version = 11 : i64} {
  func.func @_gru_rec_kernel(%arg0: i32, %arg1: i32, %arg2: memref<4x2x384xf32, #tpu.memory_space<vmem>>, %arg3: memref<128x384xbf16, #tpu.memory_space<vmem>>, %arg4: memref<1x384xf32, #tpu.memory_space<vmem>>, %arg5: memref<2x1xi32, #tpu.memory_space<vmem>>, %arg6: memref<2x128xf32, #tpu.memory_space<vmem>>) attributes {dimension_semantics = [#tpu.dimension_semantics<parallel>, #tpu.dimension_semantics<arbitrary>], iteration_bounds = array<i64: 1, 2>, scalar_prefetch = 0 : i64, scratch_operands = 0 : i64, tpu.core_type = #tpu.core_type<tc>, window_params = [{transform_indices = @transform_0, window_bounds = array<i64: 4, 2, 384>}, {pipeline_mode = #tpu.pipeline_mode<synchronous>, transform_indices = @transform_1, window_bounds = array<i64: 128, 384>}, {pipeline_mode = #tpu.pipeline_mode<synchronous>, transform_indices = @transform_2, window_bounds = array<i64: 1, 384>}, {transform_indices = @transform_3, window_bounds = array<i64: 2, 1>}, {transform_indices = @transform_4, window_bounds = array<i64: 2, 128>}]} {
    %c0_i32 = arith.constant 0 : i32
    %0 = arith.cmpi eq, %arg1, %c0_i32 : i32
    %1 = arith.extui %0 : i1 to i32
    %c0_i32_0 = arith.constant 0 : i32
    %2 = arith.cmpi ne, %1, %c0_i32_0 : i32
    scf.if %2 {
      %cst_47 = arith.constant 0.000000e+00 : f32
      %171 = vector.broadcast %cst_47 : f32 to vector<2x128xf32>
      %c0_48 = arith.constant 0 : index
      %c0_49 = arith.constant 0 : index
      %172 = vector.load %arg6[%c0_48, %c0_49] : memref<2x128xf32, #tpu.memory_space<vmem>>, vector<2x128xf32>
      tpu.vector_store %arg6[%c0_48, %c0_49], %171 {strides = array<i32>} : memref<2x128xf32, #tpu.memory_space<vmem>>, vector<2x128xf32>,
    } else {
    }
    %c0 = arith.constant 0 : index
    %c0_1 = arith.constant 0 : index
    %3 = vector.load %arg5[%c0, %c0_1] : memref<2x1xi32, #tpu.memory_space<vmem>>, vector<2x1xi32>
    %c4_i32 = arith.constant 4 : i32
    %4 = arith.muli %arg1, %c4_i32 : i32
    %c0_2 = arith.constant 0 : index
    %c0_3 = arith.constant 0 : index
    %5 = vector.load %arg6[%c0_2, %c0_3] : memref<2x128xf32, #tpu.memory_space<vmem>>, vector<2x128xf32>
    %c0_i32_4 = arith.constant 0 : i32
    %6 = arith.index_cast %c0_i32_4 : i32 to index
    %c0_5 = arith.constant 0 : index
    %c0_6 = arith.constant 0 : index
    %7 = vector.load %arg2[%6, %c0_5, %c0_6] : memref<4x2x384xf32, #tpu.memory_space<vmem>>, vector<1x2x384xf32>
    %8 = vector.shape_cast %7 : vector<1x2x384xf32> to vector<2x384xf32>
    %9 = arith.truncf %5 : vector<2x128xf32> to vector<2x128xbf16>
    %c0_7 = arith.constant 0 : index
    %c0_8 = arith.constant 0 : index
    %10 = vector.load %arg3[%c0_7, %c0_8] : memref<128x384xbf16, #tpu.memory_space<vmem>>, vector<128x384xbf16>
    %cst = arith.constant dense<0.000000e+00> : vector<2x384xf32>
    %11 = tpu.matmul %9, %10, %cst {dimension_numbers = #tpu.dot_dimension_numbers<[1], [0], [0], [1], [0, 0, 1, 1], [], []>} : vector<2x128xbf16>, vector<128x384xbf16>, vector<2x384xf32> -> vector<2x384xf32>
    %c0_9 = arith.constant 0 : index
    %c0_10 = arith.constant 0 : index
    %12 = vector.load %arg4[%c0_9, %c0_10] : memref<1x384xf32, #tpu.memory_space<vmem>>, vector<1x384xf32>
    %13 = vector.broadcast %12 : vector<1x384xf32> to vector<2x384xf32>
    %14 = arith.addf %11, %13 : vector<2x384xf32>
    %15 = vector.extract_strided_slice %8 {offsets = [0, 0], sizes = [2, 128], strides = [1, 1]} : vector<2x384xf32> to vector<2x128xf32>
    %16 = vector.extract_strided_slice %14 {offsets = [0, 0], sizes = [2, 128], strides = [1, 1]} : vector<2x384xf32> to vector<2x128xf32>
    %17 = arith.addf %15, %16 : vector<2x128xf32>
    %18 = arith.negf %17 : vector<2x128xf32>
    %19 = math.exp %18 : vector<2x128xf32>
    %cst_11 = arith.constant 1.000000e+00 : f32
    %20 = vector.broadcast %cst_11 : f32 to vector<2x128xf32>
    %21 = arith.addf %20, %19 : vector<2x128xf32>
    %22 = arith.divf %20, %21 : vector<2x128xf32>
    %23 = vector.extract_strided_slice %8 {offsets = [0, 128], sizes = [2, 128], strides = [1, 1]} : vector<2x384xf32> to vector<2x128xf32>
    %24 = vector.extract_strided_slice %14 {offsets = [0, 128], sizes = [2, 128], strides = [1, 1]} : vector<2x384xf32> to vector<2x128xf32>
    %25 = arith.addf %23, %24 : vector<2x128xf32>
    %26 = arith.negf %25 : vector<2x128xf32>
    %27 = math.exp %26 : vector<2x128xf32>
    %cst_12 = arith.constant 1.000000e+00 : f32
    %28 = vector.broadcast %cst_12 : f32 to vector<2x128xf32>
    %29 = arith.addf %28, %27 : vector<2x128xf32>
    %30 = arith.divf %28, %29 : vector<2x128xf32>
    %31 = vector.extract_strided_slice %8 {offsets = [0, 256], sizes = [2, 128], strides = [1, 1]} : vector<2x384xf32> to vector<2x128xf32>
    %32 = vector.extract_strided_slice %14 {offsets = [0, 256], sizes = [2, 128], strides = [1, 1]} : vector<2x384xf32> to vector<2x128xf32>
    %33 = arith.mulf %22, %32 : vector<2x128xf32>
    %34 = arith.addf %31, %33 : vector<2x128xf32>
    %35 = math.tanh %34 : vector<2x128xf32>
    %cst_13 = arith.constant 1.000000e+00 : f32
    %36 = vector.broadcast %cst_13 : f32 to vector<2x128xf32>
    %37 = arith.subf %36, %30 : vector<2x128xf32>
    %38 = arith.mulf %37, %35 : vector<2x128xf32>
    %39 = arith.mulf %30, %5 : vector<2x128xf32>
    %40 = arith.addf %38, %39 : vector<2x128xf32>
    %41 = arith.addi %4, %c0_i32_4 : i32
    %42 = vector.broadcast %41 : i32 to vector<2x1xi32>
    %43 = arith.cmpi slt, %42, %3 : vector<2x1xi32>
    %44 = vector.shape_cast %43 : vector<2x1xi1> to vector<2x1xi1>
    %45 = vector.broadcast %44 : vector<2x1xi1> to vector<2x128xi1>
    %46 = arith.select %45, %40, %5 : vector<2x128xi1>, vector<2x128xf32>
    %c1_i32 = arith.constant 1 : i32
    %47 = arith.index_cast %c1_i32 : i32 to index
    %c0_14 = arith.constant 0 : index
    %c0_15 = arith.constant 0 : index
    %48 = vector.load %arg2[%47, %c0_14, %c0_15] : memref<4x2x384xf32, #tpu.memory_space<vmem>>, vector<1x2x384xf32>
    %49 = vector.shape_cast %48 : vector<1x2x384xf32> to vector<2x384xf32>
    %50 = arith.truncf %46 : vector<2x128xf32> to vector<2x128xbf16>
    %c0_16 = arith.constant 0 : index
    %c0_17 = arith.constant 0 : index
    %51 = vector.load %arg3[%c0_16, %c0_17] : memref<128x384xbf16, #tpu.memory_space<vmem>>, vector<128x384xbf16>
    %cst_18 = arith.constant dense<0.000000e+00> : vector<2x384xf32>
    %52 = tpu.matmul %50, %51, %cst_18 {dimension_numbers = #tpu.dot_dimension_numbers<[1], [0], [0], [1], [0, 0, 1, 1], [], []>} : vector<2x128xbf16>, vector<128x384xbf16>, vector<2x384xf32> -> vector<2x384xf32>
    %c0_19 = arith.constant 0 : index
    %c0_20 = arith.constant 0 : index
    %53 = vector.load %arg4[%c0_19, %c0_20] : memref<1x384xf32, #tpu.memory_space<vmem>>, vector<1x384xf32>
    %54 = vector.broadcast %53 : vector<1x384xf32> to vector<2x384xf32>
    %55 = arith.addf %52, %54 : vector<2x384xf32>
    %56 = vector.extract_strided_slice %49 {offsets = [0, 0], sizes = [2, 128], strides = [1, 1]} : vector<2x384xf32> to vector<2x128xf32>
    %57 = vector.extract_strided_slice %55 {offsets = [0, 0], sizes = [2, 128], strides = [1, 1]} : vector<2x384xf32> to vector<2x128xf32>
    %58 = arith.addf %56, %57 : vector<2x128xf32>
    %59 = arith.negf %58 : vector<2x128xf32>
    %60 = math.exp %59 : vector<2x128xf32>
    %cst_21 = arith.constant 1.000000e+00 : f32
    %61 = vector.broadcast %cst_21 : f32 to vector<2x128xf32>
    %62 = arith.addf %61, %60 : vector<2x128xf32>
    %63 = arith.divf %61, %62 : vector<2x128xf32>
    %64 = vector.extract_strided_slice %49 {offsets = [0, 128], sizes = [2, 128], strides = [1, 1]} : vector<2x384xf32> to vector<2x128xf32>
    %65 = vector.extract_strided_slice %55 {offsets = [0, 128], sizes = [2, 128], strides = [1, 1]} : vector<2x384xf32> to vector<2x128xf32>
    %66 = arith.addf %64, %65 : vector<2x128xf32>
    %67 = arith.negf %66 : vector<2x128xf32>
    %68 = math.exp %67 : vector<2x128xf32>
    %cst_22 = arith.constant 1.000000e+00 : f32
    %69 = vector.broadcast %cst_22 : f32 to vector<2x128xf32>
    %70 = arith.addf %69, %68 : vector<2x128xf32>
    %71 = arith.divf %69, %70 : vector<2x128xf32>
    %72 = vector.extract_strided_slice %49 {offsets = [0, 256], sizes = [2, 128], strides = [1, 1]} : vector<2x384xf32> to vector<2x128xf32>
    %73 = vector.extract_strided_slice %55 {offsets = [0, 256], sizes = [2, 128], strides = [1, 1]} : vector<2x384xf32> to vector<2x128xf32>
    %74 = arith.mulf %63, %73 : vector<2x128xf32>
    %75 = arith.addf %72, %74 : vector<2x128xf32>
    %76 = math.tanh %75 : vector<2x128xf32>
    %cst_23 = arith.constant 1.000000e+00 : f32
    %77 = vector.broadcast %cst_23 : f32 to vector<2x128xf32>
    %78 = arith.subf %77, %71 : vector<2x128xf32>
    %79 = arith.mulf %78, %76 : vector<2x128xf32>
    %80 = arith.mulf %71, %46 : vector<2x128xf32>
    %81 = arith.addf %79, %80 : vector<2x128xf32>
    %82 = arith.addi %4, %c1_i32 : i32
    %83 = vector.broadcast %82 : i32 to vector<2x1xi32>
    %84 = arith.cmpi slt, %83, %3 : vector<2x1xi32>
    %85 = vector.shape_cast %84 : vector<2x1xi1> to vector<2x1xi1>
    %86 = vector.broadcast %85 : vector<2x1xi1> to vector<2x128xi1>
    %87 = arith.select %86, %81, %46 : vector<2x128xi1>, vector<2x128xf32>
    %c2_i32 = arith.constant 2 : i32
    %88 = arith.index_cast %c2_i32 : i32 to index
    %c0_24 = arith.constant 0 : index
    %c0_25 = arith.constant 0 : index
    %89 = vector.load %arg2[%88, %c0_24, %c0_25] : memref<4x2x384xf32, #tpu.memory_space<vmem>>, vector<1x2x384xf32>
    %90 = vector.shape_cast %89 : vector<1x2x384xf32> to vector<2x384xf32>
    %91 = arith.truncf %87 : vector<2x128xf32> to vector<2x128xbf16>
    %c0_26 = arith.constant 0 : index
    %c0_27 = arith.constant 0 : index
    %92 = vector.load %arg3[%c0_26, %c0_27] : memref<128x384xbf16, #tpu.memory_space<vmem>>, vector<128x384xbf16>
    %cst_28 = arith.constant dense<0.000000e+00> : vector<2x384xf32>
    %93 = tpu.matmul %91, %92, %cst_28 {dimension_numbers = #tpu.dot_dimension_numbers<[1], [0], [0], [1], [0, 0, 1, 1], [], []>} : vector<2x128xbf16>, vector<128x384xbf16>, vector<2x384xf32> -> vector<2x384xf32>
    %c0_29 = arith.constant 0 : index
    %c0_30 = arith.constant 0 : index
    %94 = vector.load %arg4[%c0_29, %c0_30] : memref<1x384xf32, #tpu.memory_space<vmem>>, vector<1x384xf32>
    %95 = vector.broadcast %94 : vector<1x384xf32> to vector<2x384xf32>
    %96 = arith.addf %93, %95 : vector<2x384xf32>
    %97 = vector.extract_strided_slice %90 {offsets = [0, 0], sizes = [2, 128], strides = [1, 1]} : vector<2x384xf32> to vector<2x128xf32>
    %98 = vector.extract_strided_slice %96 {offsets = [0, 0], sizes = [2, 128], strides = [1, 1]} : vector<2x384xf32> to vector<2x128xf32>
    %99 = arith.addf %97, %98 : vector<2x128xf32>
    %100 = arith.negf %99 : vector<2x128xf32>
    %101 = math.exp %100 : vector<2x128xf32>
    %cst_31 = arith.constant 1.000000e+00 : f32
    %102 = vector.broadcast %cst_31 : f32 to vector<2x128xf32>
    %103 = arith.addf %102, %101 : vector<2x128xf32>
    %104 = arith.divf %102, %103 : vector<2x128xf32>
    %105 = vector.extract_strided_slice %90 {offsets = [0, 128], sizes = [2, 128], strides = [1, 1]} : vector<2x384xf32> to vector<2x128xf32>
    %106 = vector.extract_strided_slice %96 {offsets = [0, 128], sizes = [2, 128], strides = [1, 1]} : vector<2x384xf32> to vector<2x128xf32>
    %107 = arith.addf %105, %106 : vector<2x128xf32>
    %108 = arith.negf %107 : vector<2x128xf32>
    %109 = math.exp %108 : vector<2x128xf32>
    %cst_32 = arith.constant 1.000000e+00 : f32
    %110 = vector.broadcast %cst_32 : f32 to vector<2x128xf32>
    %111 = arith.addf %110, %109 : vector<2x128xf32>
    %112 = arith.divf %110, %111 : vector<2x128xf32>
    %113 = vector.extract_strided_slice %90 {offsets = [0, 256], sizes = [2, 128], strides = [1, 1]} : vector<2x384xf32> to vector<2x128xf32>
    %114 = vector.extract_strided_slice %96 {offsets = [0, 256], sizes = [2, 128], strides = [1, 1]} : vector<2x384xf32> to vector<2x128xf32>
    %115 = arith.mulf %104, %114 : vector<2x128xf32>
    %116 = arith.addf %113, %115 : vector<2x128xf32>
    %117 = math.tanh %116 : vector<2x128xf32>
    %cst_33 = arith.constant 1.000000e+00 : f32
    %118 = vector.broadcast %cst_33 : f32 to vector<2x128xf32>
    %119 = arith.subf %118, %112 : vector<2x128xf32>
    %120 = arith.mulf %119, %117 : vector<2x128xf32>
    %121 = arith.mulf %112, %87 : vector<2x128xf32>
    %122 = arith.addf %120, %121 : vector<2x128xf32>
    %123 = arith.addi %4, %c2_i32 : i32
    %124 = vector.broadcast %123 : i32 to vector<2x1xi32>
    %125 = arith.cmpi slt, %124, %3 : vector<2x1xi32>
    %126 = vector.shape_cast %125 : vector<2x1xi1> to vector<2x1xi1>
    %127 = vector.broadcast %126 : vector<2x1xi1> to vector<2x128xi1>
    %128 = arith.select %127, %122, %87 : vector<2x128xi1>, vector<2x128xf32>
    %c3_i32 = arith.constant 3 : i32
    %129 = arith.index_cast %c3_i32 : i32 to index
    %c0_34 = arith.constant 0 : index
    %c0_35 = arith.constant 0 : index
    %130 = vector.load %arg2[%129, %c0_34, %c0_35] : memref<4x2x384xf32, #tpu.memory_space<vmem>>, vector<1x2x384xf32>
    %131 = vector.shape_cast %130 : vector<1x2x384xf32> to vector<2x384xf32>
    %132 = arith.truncf %128 : vector<2x128xf32> to vector<2x128xbf16>
    %c0_36 = arith.constant 0 : index
    %c0_37 = arith.constant 0 : index
    %133 = vector.load %arg3[%c0_36, %c0_37] : memref<128x384xbf16, #tpu.memory_space<vmem>>, vector<128x384xbf16>
    %cst_38 = arith.constant dense<0.000000e+00> : vector<2x384xf32>
    %134 = tpu.matmul %132, %133, %cst_38 {dimension_numbers = #tpu.dot_dimension_numbers<[1], [0], [0], [1], [0, 0, 1, 1], [], []>} : vector<2x128xbf16>, vector<128x384xbf16>, vector<2x384xf32> -> vector<2x384xf32>
    %c0_39 = arith.constant 0 : index
    %c0_40 = arith.constant 0 : index
    %135 = vector.load %arg4[%c0_39, %c0_40] : memref<1x384xf32, #tpu.memory_space<vmem>>, vector<1x384xf32>
    %136 = vector.broadcast %135 : vector<1x384xf32> to vector<2x384xf32>
    %137 = arith.addf %134, %136 : vector<2x384xf32>
    %138 = vector.extract_strided_slice %131 {offsets = [0, 0], sizes = [2, 128], strides = [1, 1]} : vector<2x384xf32> to vector<2x128xf32>
    %139 = vector.extract_strided_slice %137 {offsets = [0, 0], sizes = [2, 128], strides = [1, 1]} : vector<2x384xf32> to vector<2x128xf32>
    %140 = arith.addf %138, %139 : vector<2x128xf32>
    %141 = arith.negf %140 : vector<2x128xf32>
    %142 = math.exp %141 : vector<2x128xf32>
    %cst_41 = arith.constant 1.000000e+00 : f32
    %143 = vector.broadcast %cst_41 : f32 to vector<2x128xf32>
    %144 = arith.addf %143, %142 : vector<2x128xf32>
    %145 = arith.divf %143, %144 : vector<2x128xf32>
    %146 = vector.extract_strided_slice %131 {offsets = [0, 128], sizes = [2, 128], strides = [1, 1]} : vector<2x384xf32> to vector<2x128xf32>
    %147 = vector.extract_strided_slice %137 {offsets = [0, 128], sizes = [2, 128], strides = [1, 1]} : vector<2x384xf32> to vector<2x128xf32>
    %148 = arith.addf %146, %147 : vector<2x128xf32>
    %149 = arith.negf %148 : vector<2x128xf32>
    %150 = math.exp %149 : vector<2x128xf32>
    %cst_42 = arith.constant 1.000000e+00 : f32
    %151 = vector.broadcast %cst_42 : f32 to vector<2x128xf32>
    %152 = arith.addf %151, %150 : vector<2x128xf32>
    %153 = arith.divf %151, %152 : vector<2x128xf32>
    %154 = vector.extract_strided_slice %131 {offsets = [0, 256], sizes = [2, 128], strides = [1, 1]} : vector<2x384xf32> to vector<2x128xf32>
    %155 = vector.extract_strided_slice %137 {offsets = [0, 256], sizes = [2, 128], strides = [1, 1]} : vector<2x384xf32> to vector<2x128xf32>
    %156 = arith.mulf %145, %155 : vector<2x128xf32>
    %157 = arith.addf %154, %156 : vector<2x128xf32>
    %158 = math.tanh %157 : vector<2x128xf32>
    %cst_43 = arith.constant 1.000000e+00 : f32
    %159 = vector.broadcast %cst_43 : f32 to vector<2x128xf32>
    %160 = arith.subf %159, %153 : vector<2x128xf32>
    %161 = arith.mulf %160, %158 : vector<2x128xf32>
    %162 = arith.mulf %153, %128 : vector<2x128xf32>
    %163 = arith.addf %161, %162 : vector<2x128xf32>
    %164 = arith.addi %4, %c3_i32 : i32
    %165 = vector.broadcast %164 : i32 to vector<2x1xi32>
    %166 = arith.cmpi slt, %165, %3 : vector<2x1xi32>
    %167 = vector.shape_cast %166 : vector<2x1xi1> to vector<2x1xi1>
    %168 = vector.broadcast %167 : vector<2x1xi1> to vector<2x128xi1>
    %169 = arith.select %168, %163, %128 : vector<2x128xi1>, vector<2x128xf32>
    %c4_i32_44 = arith.constant 4 : i32
    %c0_45 = arith.constant 0 : index
    %c0_46 = arith.constant 0 : index
    %170 = vector.load %arg6[%c0_45, %c0_46] : memref<2x128xf32, #tpu.memory_space<vmem>>, vector<2x128xf32>
    tpu.vector_store %arg6[%c0_45, %c0_46], %169 {strides = array<i32>} : memref<2x128xf32, #tpu.memory_space<vmem>>, vector<2x128xf32>,
    return
  }
  func.func @transform_0(%arg0: i32, %arg1: i32) -> (i32, i32, i32) {
    %c0_i32 = arith.constant 0 : i32
    %c0_i32_0 = arith.constant 0 : i32
    return %arg1, %arg0, %c0_i32 : i32, i32, i32
  }
  func.func @transform_1(%arg0: i32, %arg1: i32) -> (i32, i32) {
    %c0_i32 = arith.constant 0 : i32
    %c0_i32_0 = arith.constant 0 : i32
    %c0_i32_1 = arith.constant 0 : i32
    return %c0_i32, %c0_i32_0 : i32, i32
  }
  func.func @transform_2(%arg0: i32, %arg1: i32) -> (i32, i32) {
    %c0_i32 = arith.constant 0 : i32
    %c0_i32_0 = arith.constant 0 : i32
    %c0_i32_1 = arith.constant 0 : i32
    return %c0_i32, %c0_i32_0 : i32, i32
  }
  func.func @transform_3(%arg0: i32, %arg1: i32) -> (i32, i32) {
    %c0_i32 = arith.constant 0 : i32
    %c0_i32_0 = arith.constant 0 : i32
    return %arg0, %c0_i32 : i32, i32
  }
  func.func @transform_4(%arg0: i32, %arg1: i32) -> (i32, i32) {
    %c0_i32 = arith.constant 0 : i32
    %c0_i32_0 = arith.constant 0 : i32
    return %arg0, %c0_i32 : i32, i32
  }
}

module attributes {stable_mosaic.version = 11 : i64} {
  func.func @_attention_pool_kernel(%arg0: i32, %arg1: memref<1x128x16xf32, #tpu.memory_space<vmem>>, %arg2: memref<1x32x1xf32, #tpu.memory_space<vmem>>, %arg3: memref<32x128xbf16, #tpu.memory_space<vmem>>, %arg4: memref<2x32xbf16, #tpu.memory_space<vmem>>, %arg5: memref<2x1xf32, #tpu.memory_space<vmem>>, %arg6: memref<1x2x128xf32, #tpu.memory_space<vmem>>) attributes {dimension_semantics = [#tpu.dimension_semantics<parallel>], iteration_bounds = array<i64: 2>, scalar_prefetch = 0 : i64, scratch_operands = 0 : i64, tpu.core_type = #tpu.core_type<tc>, window_params = [{transform_indices = @transform_0, window_bounds = array<i64: 1, 128, 16>}, {transform_indices = @transform_1, window_bounds = array<i64: 1, 32, 1>}, {pipeline_mode = #tpu.pipeline_mode<synchronous>, transform_indices = @transform_2, window_bounds = array<i64: 32, 128>}, {pipeline_mode = #tpu.pipeline_mode<synchronous>, transform_indices = @transform_3, window_bounds = array<i64: 2, 32>}, {pipeline_mode = #tpu.pipeline_mode<synchronous>, transform_indices = @transform_4, window_bounds = array<i64: 2, 1>}, {transform_indices = @transform_5, window_bounds = array<i64: 1, 2, 128>}]} {
    %c0 = arith.constant 0 : index
    %c0_0 = arith.constant 0 : index
    %c0_1 = arith.constant 0 : index
    %0 = vector.load %arg1[%c0, %c0_0, %c0_1] : memref<1x128x16xf32, #tpu.memory_space<vmem>>, vector<1x128x16xf32>
    %1 = vector.shape_cast %0 : vector<1x128x16xf32> to vector<128x16xf32>
    %2 = arith.mulf %1, %1 : vector<128x16xf32>
    %cst = arith.constant dense<0.000000e+00> : vector<16xf32>
    %3 = vector.multi_reduction <add>, %2, %cst [0] : vector<128x16xf32> to vector<16xf32>
    %4 = vector.shape_cast %3 : vector<16xf32> to vector<1x16xf32>
    %5 = math.sqrt %4 : vector<1x16xf32>
    %cst_2 = arith.constant 9.99999996E-13 : f32
    %6 = vector.broadcast %cst_2 : f32 to vector<1x16xf32>
    %7 = arith.addf %5, %6 : vector<1x16xf32>
    %8 = tpu.reciprocal %7 : vector<1x16xf32> -> vector<1x16xf32>
    %9 = vector.broadcast %8 : vector<1x16xf32> to vector<128x16xf32>
    %10 = arith.mulf %1, %9 : vector<128x16xf32>
    %11 = arith.truncf %10 : vector<128x16xf32> to vector<128x16xbf16>
    %c0_3 = arith.constant 0 : index
    %c0_4 = arith.constant 0 : index
    %c0_5 = arith.constant 0 : index
    %12 = vector.load %arg2[%c0_3, %c0_4, %c0_5] : memref<1x32x1xf32, #tpu.memory_space<vmem>>, vector<1x32x1xf32>
    %13 = vector.shape_cast %12 : vector<1x32x1xf32> to vector<32x1xf32>
    %c0_6 = arith.constant 0 : index
    %c0_7 = arith.constant 0 : index
    %14 = vector.load %arg3[%c0_6, %c0_7] : memref<32x128xbf16, #tpu.memory_space<vmem>>, vector<32x128xbf16>
    %cst_8 = arith.constant dense<0.000000e+00> : vector<32x16xf32>
    %15 = tpu.matmul %14, %11, %cst_8 {dimension_numbers = #tpu.dot_dimension_numbers<[1], [0], [0], [1], [0, 0, 1, 1], [], []>} : vector<32x128xbf16>, vector<128x16xbf16>, vector<32x16xf32> -> vector<32x16xf32>
    %16 = vector.broadcast %13 : vector<32x1xf32> to vector<32x16xf32>
    %17 = arith.subf %15, %16 : vector<32x16xf32>
    %18 = arith.mulf %17, %17 : vector<32x16xf32>
    %cst_9 = arith.constant 0.000000e+00 : f32
    %19 = vector.broadcast %cst_9 : f32 to vector<32x16xf32>
    %20 = arith.subf %19, %18 : vector<32x16xf32>
    %21 = vector.broadcast %13 : vector<32x1xf32> to vector<32x16xf32>
    %22 = arith.addf %15, %21 : vector<32x16xf32>
    %cst_10 = arith.constant 0.000000e+00 : f32
    %23 = vector.broadcast %cst_10 : f32 to vector<32x16xf32>
    %24 = arith.maximumf %22, %23 : vector<32x16xf32>
    %25 = arith.addf %20, %24 : vector<32x16xf32>
    %c0_11 = arith.constant 0 : index
    %c0_12 = arith.constant 0 : index
    %26 = vector.load %arg4[%c0_11, %c0_12] : memref<2x32xbf16, #tpu.memory_space<vmem>>, vector<2x32xbf16>
    %27 = arith.truncf %25 : vector<32x16xf32> to vector<32x16xbf16>
    %cst_13 = arith.constant dense<0.000000e+00> : vector<2x16xf32>
    %28 = tpu.matmul %26, %27, %cst_13 {dimension_numbers = #tpu.dot_dimension_numbers<[1], [0], [0], [1], [0, 0, 1, 1], [], []>} : vector<2x32xbf16>, vector<32x16xbf16>, vector<2x16xf32> -> vector<2x16xf32>
    %c0_14 = arith.constant 0 : index
    %c0_15 = arith.constant 0 : index
    %29 = vector.load %arg5[%c0_14, %c0_15] : memref<2x1xf32, #tpu.memory_space<vmem>>, vector<2x1xf32>
    %30 = vector.broadcast %29 : vector<2x1xf32> to vector<2x16xf32>
    %31 = arith.addf %28, %30 : vector<2x16xf32>
    %cst_16 = arith.constant dense<0xFF800000> : vector<2xf32>
    %32 = vector.multi_reduction <maximumf>, %31, %cst_16 [1] : vector<2x16xf32> to vector<2xf32>
    %33 = vector.shape_cast %32 : vector<2xf32> to vector<2x1xf32>
    %34 = vector.broadcast %33 : vector<2x1xf32> to vector<2x16xf32>
    %35 = arith.subf %31, %34 : vector<2x16xf32>
    %36 = math.exp %35 : vector<2x16xf32>
    %cst_17 = arith.constant dense<0.000000e+00> : vector<2xf32>
    %37 = vector.multi_reduction <add>, %36, %cst_17 [1] : vector<2x16xf32> to vector<2xf32>
    %38 = vector.shape_cast %37 : vector<2xf32> to vector<2x1xf32>
    %39 = tpu.reciprocal %38 : vector<2x1xf32> -> vector<2x1xf32>
    %40 = vector.broadcast %39 : vector<2x1xf32> to vector<2x16xf32>
    %41 = arith.mulf %36, %40 : vector<2x16xf32>
    %42 = arith.truncf %41 : vector<2x16xf32> to vector<2x16xbf16>
    %cst_18 = arith.constant dense<0.000000e+00> : vector<2x128xf32>
    %43 = tpu.matmul %42, %11, %cst_18 {dimension_numbers = #tpu.dot_dimension_numbers<[1], [1], [0], [0], [0, 0, 1, 0], [], []>} : vector<2x16xbf16>, vector<128x16xbf16>, vector<2x128xf32> -> vector<2x128xf32>
    %44 = vector.shape_cast %43 : vector<2x128xf32> to vector<1x2x128xf32>
    %c0_19 = arith.constant 0 : index
    %c0_20 = arith.constant 0 : index
    %c0_21 = arith.constant 0 : index
    %45 = vector.load %arg6[%c0_19, %c0_20, %c0_21] : memref<1x2x128xf32, #tpu.memory_space<vmem>>, vector<1x2x128xf32>
    tpu.vector_store %arg6[%c0_19, %c0_20, %c0_21], %44 {strides = array<i32>} : memref<1x2x128xf32, #tpu.memory_space<vmem>>, vector<1x2x128xf32>,
    return
  }
  func.func @transform_0(%arg0: i32) -> (i32, i32, i32) {
    %c0_i32 = arith.constant 0 : i32
    %c0_i32_0 = arith.constant 0 : i32
    %c0_i32_1 = arith.constant 0 : i32
    return %arg0, %c0_i32, %c0_i32_0 : i32, i32, i32
  }
  func.func @transform_1(%arg0: i32) -> (i32, i32, i32) {
    %c0_i32 = arith.constant 0 : i32
    %c0_i32_0 = arith.constant 0 : i32
    %c0_i32_1 = arith.constant 0 : i32
    return %arg0, %c0_i32, %c0_i32_0 : i32, i32, i32
  }
  func.func @transform_2(%arg0: i32) -> (i32, i32) {
    %c0_i32 = arith.constant 0 : i32
    %c0_i32_0 = arith.constant 0 : i32
    %c0_i32_1 = arith.constant 0 : i32
    return %c0_i32, %c0_i32_0 : i32, i32
  }
  func.func @transform_3(%arg0: i32) -> (i32, i32) {
    %c0_i32 = arith.constant 0 : i32
    %c0_i32_0 = arith.constant 0 : i32
    %c0_i32_1 = arith.constant 0 : i32
    return %c0_i32, %c0_i32_0 : i32, i32
  }
  func.func @transform_4(%arg0: i32) -> (i32, i32) {
    %c0_i32 = arith.constant 0 : i32
    %c0_i32_0 = arith.constant 0 : i32
    %c0_i32_1 = arith.constant 0 : i32
    return %c0_i32, %c0_i32_0 : i32, i32
  }
  func.func @transform_5(%arg0: i32) -> (i32, i32, i32) {
    %c0_i32 = arith.constant 0 : i32
    %c0_i32_0 = arith.constant 0 : i32
    %c0_i32_1 = arith.constant 0 : i32
    return %arg0, %c0_i32, %c0_i32_0 : i32, i32, i32
  }
}

module attributes {stable_mosaic.version = 11 : i64} {
  func.func @_classifier_kernel(%arg0: i32, %arg1: memref<2x256xf32, #tpu.memory_space<vmem>>, %arg2: memref<2x128xf32, #tpu.memory_space<vmem>>, %arg3: memref<2x11xf32, #tpu.memory_space<vmem>>, %arg4: memref<256x128xbf16, #tpu.memory_space<vmem>>, %arg5: memref<1x128xf32, #tpu.memory_space<vmem>>, %arg6: memref<128x128xbf16, #tpu.memory_space<vmem>>, %arg7: memref<1x128xf32, #tpu.memory_space<vmem>>, %arg8: memref<11x128xbf16, #tpu.memory_space<vmem>>, %arg9: memref<1x128xf32, #tpu.memory_space<vmem>>, %arg10: memref<128x128xbf16, #tpu.memory_space<vmem>>, %arg11: memref<1x128xf32, #tpu.memory_space<vmem>>, %arg12: memref<2x128xf32, #tpu.memory_space<vmem>>) attributes {dimension_semantics = [#tpu.dimension_semantics<parallel>], iteration_bounds = array<i64: 1>, scalar_prefetch = 0 : i64, scratch_operands = 0 : i64, tpu.core_type = #tpu.core_type<tc>, window_params = [{transform_indices = @transform_0, window_bounds = array<i64: 2, 256>}, {transform_indices = @transform_1, window_bounds = array<i64: 2, 128>}, {transform_indices = @transform_2, window_bounds = array<i64: 2, 11>}, {pipeline_mode = #tpu.pipeline_mode<synchronous>, transform_indices = @transform_3, window_bounds = array<i64: 256, 128>}, {pipeline_mode = #tpu.pipeline_mode<synchronous>, transform_indices = @transform_4, window_bounds = array<i64: 1, 128>}, {pipeline_mode = #tpu.pipeline_mode<synchronous>, transform_indices = @transform_5, window_bounds = array<i64: 128, 128>}, {pipeline_mode = #tpu.pipeline_mode<synchronous>, transform_indices = @transform_6, window_bounds = array<i64: 1, 128>}, {pipeline_mode = #tpu.pipeline_mode<synchronous>, transform_indices = @transform_7, window_bounds = array<i64: 11, 128>}, {pipeline_mode = #tpu.pipeline_mode<synchronous>, transform_indices = @transform_8, window_bounds = array<i64: 1, 128>}, {pipeline_mode = #tpu.pipeline_mode<synchronous>, transform_indices = @transform_9, window_bounds = array<i64: 128, 128>}, {pipeline_mode = #tpu.pipeline_mode<synchronous>, transform_indices = @transform_10, window_bounds = array<i64: 1, 128>}, {transform_indices = @transform_11, window_bounds = array<i64: 2, 128>}]} {
    %c0 = arith.constant 0 : index
    %c0_0 = arith.constant 0 : index
    %0 = vector.load %arg1[%c0, %c0_0] : memref<2x256xf32, #tpu.memory_space<vmem>>, vector<2x256xf32>
    %1 = arith.truncf %0 : vector<2x256xf32> to vector<2x256xbf16>
    %c0_1 = arith.constant 0 : index
    %c0_2 = arith.constant 0 : index
    %2 = vector.load %arg4[%c0_1, %c0_2] : memref<256x128xbf16, #tpu.memory_space<vmem>>, vector<256x128xbf16>
    %cst = arith.constant dense<0.000000e+00> : vector<2x128xf32>
    %3 = tpu.matmul %1, %2, %cst {dimension_numbers = #tpu.dot_dimension_numbers<[1], [0], [0], [1], [0, 0, 1, 1], [], []>} : vector<2x256xbf16>, vector<256x128xbf16>, vector<2x128xf32> -> vector<2x128xf32>
    %c0_3 = arith.constant 0 : index
    %c0_4 = arith.constant 0 : index
    %4 = vector.load %arg5[%c0_3, %c0_4] : memref<1x128xf32, #tpu.memory_space<vmem>>, vector<1x128xf32>
    %5 = vector.broadcast %4 : vector<1x128xf32> to vector<2x128xf32>
    %6 = arith.addf %3, %5 : vector<2x128xf32>
    %c0_5 = arith.constant 0 : index
    %c0_6 = arith.constant 0 : index
    %7 = vector.load %arg2[%c0_5, %c0_6] : memref<2x128xf32, #tpu.memory_space<vmem>>, vector<2x128xf32>
    %8 = arith.truncf %7 : vector<2x128xf32> to vector<2x128xbf16>
    %c0_7 = arith.constant 0 : index
    %c0_8 = arith.constant 0 : index
    %9 = vector.load %arg6[%c0_7, %c0_8] : memref<128x128xbf16, #tpu.memory_space<vmem>>, vector<128x128xbf16>
    %cst_9 = arith.constant dense<0.000000e+00> : vector<2x128xf32>
    %10 = tpu.matmul %8, %9, %cst_9 {dimension_numbers = #tpu.dot_dimension_numbers<[1], [0], [0], [1], [0, 0, 1, 1], [], []>} : vector<2x128xbf16>, vector<128x128xbf16>, vector<2x128xf32> -> vector<2x128xf32>
    %c0_10 = arith.constant 0 : index
    %c0_11 = arith.constant 0 : index
    %11 = vector.load %arg7[%c0_10, %c0_11] : memref<1x128xf32, #tpu.memory_space<vmem>>, vector<1x128xf32>
    %12 = vector.broadcast %11 : vector<1x128xf32> to vector<2x128xf32>
    %13 = arith.addf %10, %12 : vector<2x128xf32>
    %14 = arith.subf %6, %13 : vector<2x128xf32>
    %15 = arith.mulf %14, %14 : vector<2x128xf32>
    %cst_12 = arith.constant 0.000000e+00 : f32
    %16 = vector.broadcast %cst_12 : f32 to vector<2x128xf32>
    %17 = arith.subf %16, %15 : vector<2x128xf32>
    %18 = arith.addf %6, %13 : vector<2x128xf32>
    %cst_13 = arith.constant 0.000000e+00 : f32
    %19 = vector.broadcast %cst_13 : f32 to vector<2x128xf32>
    %20 = arith.maximumf %18, %19 : vector<2x128xf32>
    %21 = arith.addf %17, %20 : vector<2x128xf32>
    %c0_14 = arith.constant 0 : index
    %c0_15 = arith.constant 0 : index
    %22 = vector.load %arg3[%c0_14, %c0_15] : memref<2x11xf32, #tpu.memory_space<vmem>>, vector<2x11xf32>
    %23 = arith.truncf %22 : vector<2x11xf32> to vector<2x11xbf16>
    %c0_16 = arith.constant 0 : index
    %c0_17 = arith.constant 0 : index
    %24 = vector.load %arg8[%c0_16, %c0_17] : memref<11x128xbf16, #tpu.memory_space<vmem>>, vector<11x128xbf16>
    %cst_18 = arith.constant dense<0.000000e+00> : vector<2x128xf32>
    %25 = tpu.matmul %23, %24, %cst_18 {dimension_numbers = #tpu.dot_dimension_numbers<[1], [0], [0], [1], [0, 0, 1, 1], [], []>} : vector<2x11xbf16>, vector<11x128xbf16>, vector<2x128xf32> -> vector<2x128xf32>
    %c0_19 = arith.constant 0 : index
    %c0_20 = arith.constant 0 : index
    %26 = vector.load %arg9[%c0_19, %c0_20] : memref<1x128xf32, #tpu.memory_space<vmem>>, vector<1x128xf32>
    %27 = vector.broadcast %26 : vector<1x128xf32> to vector<2x128xf32>
    %28 = arith.addf %25, %27 : vector<2x128xf32>
    %cst_21 = arith.constant 0.000000e+00 : f32
    %29 = vector.broadcast %cst_21 : f32 to vector<2x128xf32>
    %30 = arith.maximumf %28, %29 : vector<2x128xf32>
    %31 = arith.addf %21, %30 : vector<2x128xf32>
    %32 = arith.truncf %31 : vector<2x128xf32> to vector<2x128xbf16>
    %c0_22 = arith.constant 0 : index
    %c0_23 = arith.constant 0 : index
    %33 = vector.load %arg10[%c0_22, %c0_23] : memref<128x128xbf16, #tpu.memory_space<vmem>>, vector<128x128xbf16>
    %cst_24 = arith.constant dense<0.000000e+00> : vector<2x128xf32>
    %34 = tpu.matmul %32, %33, %cst_24 {dimension_numbers = #tpu.dot_dimension_numbers<[1], [0], [0], [1], [0, 0, 1, 1], [], []>} : vector<2x128xbf16>, vector<128x128xbf16>, vector<2x128xf32> -> vector<2x128xf32>
    %c0_25 = arith.constant 0 : index
    %c0_26 = arith.constant 0 : index
    %35 = vector.load %arg11[%c0_25, %c0_26] : memref<1x128xf32, #tpu.memory_space<vmem>>, vector<1x128xf32>
    %36 = vector.broadcast %35 : vector<1x128xf32> to vector<2x128xf32>
    %37 = arith.addf %34, %36 : vector<2x128xf32>
    %c0_27 = arith.constant 0 : index
    %c0_28 = arith.constant 0 : index
    %38 = vector.load %arg12[%c0_27, %c0_28] : memref<2x128xf32, #tpu.memory_space<vmem>>, vector<2x128xf32>
    tpu.vector_store %arg12[%c0_27, %c0_28], %37 {strides = array<i32>} : memref<2x128xf32, #tpu.memory_space<vmem>>, vector<2x128xf32>,
    return
  }
  func.func @transform_0(%arg0: i32) -> (i32, i32) {
    %c0_i32 = arith.constant 0 : i32
    %c0_i32_0 = arith.constant 0 : i32
    return %arg0, %c0_i32 : i32, i32
  }
  func.func @transform_1(%arg0: i32) -> (i32, i32) {
    %c0_i32 = arith.constant 0 : i32
    %c0_i32_0 = arith.constant 0 : i32
    return %arg0, %c0_i32 : i32, i32
  }
  func.func @transform_2(%arg0: i32) -> (i32, i32) {
    %c0_i32 = arith.constant 0 : i32
    %c0_i32_0 = arith.constant 0 : i32
    return %arg0, %c0_i32 : i32, i32
  }
  func.func @transform_3(%arg0: i32) -> (i32, i32) {
    %c0_i32 = arith.constant 0 : i32
    %c0_i32_0 = arith.constant 0 : i32
    %c0_i32_1 = arith.constant 0 : i32
    return %c0_i32, %c0_i32_0 : i32, i32
  }
  func.func @transform_4(%arg0: i32) -> (i32, i32) {
    %c0_i32 = arith.constant 0 : i32
    %c0_i32_0 = arith.constant 0 : i32
    %c0_i32_1 = arith.constant 0 : i32
    return %c0_i32, %c0_i32_0 : i32, i32
  }
  func.func @transform_5(%arg0: i32) -> (i32, i32) {
    %c0_i32 = arith.constant 0 : i32
    %c0_i32_0 = arith.constant 0 : i32
    %c0_i32_1 = arith.constant 0 : i32
    return %c0_i32, %c0_i32_0 : i32, i32
  }
  func.func @transform_6(%arg0: i32) -> (i32, i32) {
    %c0_i32 = arith.constant 0 : i32
    %c0_i32_0 = arith.constant 0 : i32
    %c0_i32_1 = arith.constant 0 : i32
    return %c0_i32, %c0_i32_0 : i32, i32
  }
  func.func @transform_7(%arg0: i32) -> (i32, i32) {
    %c0_i32 = arith.constant 0 : i32
    %c0_i32_0 = arith.constant 0 : i32
    %c0_i32_1 = arith.constant 0 : i32
    return %c0_i32, %c0_i32_0 : i32, i32
  }
  func.func @transform_8(%arg0: i32) -> (i32, i32) {
    %c0_i32 = arith.constant 0 : i32
    %c0_i32_0 = arith.constant 0 : i32
    %c0_i32_1 = arith.constant 0 : i32
    return %c0_i32, %c0_i32_0 : i32, i32
  }
  func.func @transform_9(%arg0: i32) -> (i32, i32) {
    %c0_i32 = arith.constant 0 : i32
    %c0_i32_0 = arith.constant 0 : i32
    %c0_i32_1 = arith.constant 0 : i32
    return %c0_i32, %c0_i32_0 : i32, i32
  }
  func.func @transform_10(%arg0: i32) -> (i32, i32) {
    %c0_i32 = arith.constant 0 : i32
    %c0_i32_0 = arith.constant 0 : i32
    %c0_i32_1 = arith.constant 0 : i32
    return %c0_i32, %c0_i32_0 : i32, i32
  }
  func.func @transform_11(%arg0: i32) -> (i32, i32) {
    %c0_i32 = arith.constant 0 : i32
    %c0_i32_0 = arith.constant 0 : i32
    return %arg0, %c0_i32 : i32, i32
  }
}

</mosaic_0001>

<llo_original>
// kernel: net_forward.4
$region0: #{net_forward.4}
  #allocation0 [shape = 'u32[]', space=smem, size = 0x4, offset = 0x4, fixed_abs, tag = 'smem constant byte address 0x4 - core index']
  #allocation1 [shape = 'u32[144,128]{1,0:T(1,128)}', space=vmem, size = 0x12000, scoped, tag = 'internal scratch']
  %s0 = inlined_call_operand.vmem [shape: f32[12,32], index: 0, kind: input, shape index: {}]
  %s1 = inlined_call_operand.vmem [shape: bf16[32,384], index: 1, kind: input, shape index: {}]
  %s2 = inlined_call_operand.vmem [shape: f32[1,384], index: 2, kind: input, shape index: {}]
  %s3 = inlined_call_operand.vmem [shape: f32[12,384], index: 3, kind: output, shape index: {}]
  %s4 = sld [smem:[#allocation0]]
  $region22: #{net_forward.4} parent=0
    _
  %s6 = ssub.s32 1, %s4
  %s7 = scalar_select 0, %s6, %s4
  // Predicated region
  $region2: #{net_forward.4} parent=0 // pred_check
    _
  $region3: #{net_forward.4} parent=0 // pred_check_branch
    %9 = sbr.rel (0) target = $region5
  $region4: #{net_forward.4} parent=0 // pred_region
    _
  $region5: #{net_forward.4} parent=0 // pred_fallthru
    _
  // Predicated region
  $region6: #{net_forward.4} parent=0 // pred_check
    _
  $region7: #{net_forward.4} parent=0 // pred_check_branch
    %11 = sbr.rel (0) target = $region9
  $region8: #{net_forward.4} parent=0 // pred_region
    _
  $region9: #{net_forward.4} parent=0 // pred_fallthru
    _
  // Predicated region
  $region10: #{net_forward.4} parent=0 // pred_check
    _
  $region11: #{net_forward.4} parent=0 // pred_check_branch
    %13 = sbr.rel (0) target = $region13
  $region12: #{net_forward.4} parent=0 // pred_region
    _
  $region13: #{net_forward.4} parent=0 // pred_fallthru
    _
  %v15 = vld [vmem:[%s0] sm:$0xff]
  %v16 = vld [vmem:[%s0 + $0x8] sm:$0xf]
  %v17 = vtanh.pop %v15
  %v18 = vtanh.pop %v16
  %v19 = vpack.c.bf16 %v18, %v17
  %v20 = vld [vmem:[%s1] sm:$0xff]
  %v21 = vld [vmem:[%s1 + $0x8] sm:$0xf]
  %v22 = vld [vmem:[%s1 + $0xc] sm:$0xff]
  %v23 = vld [vmem:[%s1 + $0x14] sm:$0xf]
  %v24 = vld [vmem:[%s1 + $0x18] sm:$0xff]
  %v25 = vld [vmem:[%s1 + $0x20] sm:$0xf]
  %v26 = vld [vmem:[%s1 + $0x24] sm:$0xff]
  %v27 = vld [vmem:[%s1 + $0x2c] sm:$0xf]
  %v28 = vld [vmem:[%s2] sm:$0x7]
  %v30 = vlaneseq
  %v31 = vshrl.u32 %v30, 7
  %v32 = vsub.s32 0, %v31
  %v33 = vrot.slane %v28, %v32
  %v34 = vlaneseq
  %v35 = vshrl.u32 %v34, 7
  %v36 = vsub.s32 1, %v35
  %v37 = vrot.slane %v28, %v36
  %v38 = vlaneseq
  %v39 = vshrl.u32 %v38, 7
  %v40 = vsub.s32 2, %v39
  %v41 = vrot.slane %v28, %v40
  %v53 = vunpack.c.l.b16 %v20
  %v54 = vunpack.c.h.b16 %v20
  %v55 = vunpack.c.l.b16 %v21
  %v56 = vunpack.c.l.b16 %v22
  %v57 = vunpack.c.h.b16 %v22
  %v58 = vunpack.c.l.b16 %v23
  %v59 = vunpack.c.l.b16 %v24
  %v60 = vunpack.c.h.b16 %v24
  %v61 = vunpack.c.l.b16 %v25
  %v62 = vunpack.c.l.b16 %v26
  %v63 = vunpack.c.h.b16 %v26
  %v64 = vunpack.c.l.b16 %v27
  %v65 = vpack.c.b16 %v56, %v53
  %v66 = vpack.c.b16 %v57, %v54
  %v67 = vpack.c.b16 %v58, %v55
  %v68 = vpack.c.b16 %v62, %v59
  %v69 = vpack.c.b16 %v63, %v60
  %v70 = vpack.c.b16 %v64, %v61
  %vm77 = vcmask 261120
  %v79 = vsel %vm77, %v19, 0
  %81 = vmatprep.subr.bf16.mxu0 %v66
  %82 = vmatpush1.bf16.msra.mxu0 %v65
  %83 = vmatprep.subr.bf16.mxu0 %v69
  %84 = vmatpush1.bf16.msra.mxu0 %v68
  %85 = vmatprep.subr.bf16.mxu0 0
  %86 = vmatpush1.bf16.msra.mxu0 0
  %87 = vmatprep.subr.bf16.mxu0 0
  %88 = vmatpush1.bf16.msra.mxu0 0
  %89 = vmatprep.subr.bf16.mxu0 0
  %90 = vmatpush1.bf16.msra.mxu0 0
  %91 = vmatprep.subr.bf16.mxu0 0
  %92 = vmatpush1.bf16.msra.mxu0 0
  %93 = vmatprep.subr.bf16.mxu0 0
  %94 = vmatpush1.bf16.msra.mxu0 0
  %95 = vmatprep.subr.bf16.mxu0 0
  %96 = vmatpush1.bf16.msra.mxu0 0
  %97 = vmatprep.subr.bf16.mxu0 0
  %98 = vmatpush1.bf16.msra.mxu0 0
  %99 = vmatprep.subr.bf16.mxu0 0
  %100 = vmatpush1.bf16.msra.mxu0 0
  %101 = vmatprep.subr.bf16.mxu0 0
  %102 = vmatpush1.bf16.msra.mxu0 0
  %103 = vmatprep.subr.bf16.mxu0 0
  %104 = vmatpush1.bf16.msra.mxu0 0
  %105 = vmatprep.subr.bf16.mxu0 0
  %106 = vmatpush1.bf16.msra.mxu0 0
  %107 = vmatprep.subr.bf16.mxu0 0
  %108 = vmatpush1.bf16.msra.mxu0 0
  %109 = vmatprep.subr.bf16.mxu0 0
  %110 = vmatpush1.bf16.msra.mxu0 0
  %111 = vmatprep.subr.bf16.mxu0 0
  %112 = vmatpush1.bf16.msra.mxu0 0
  %113 = vmatprep.mubr.bf16.mxu0 0
  %114 = vmatmul.mubr.bf16.gmra.mrb[0].mxu0 %v79
  %v115 = vpop.f32.mrb[0].mxu0
  %v116 = vadd.f32 %v33, %v115
  %v117 = vpop.f32.mrb[0].mxu0
  %v118 = vadd.f32 %v37, %v117
  %v119 = vpop.f32.mrb[0].mxu0
  %v120 = vadd.f32 %v33, %v119
  %v121 = vpop.f32.mrb[0].mxu0
  %v122 = vadd.f32 %v37, %v121
  %123 = vdwg.mxu0
  %124 = vmatprep.subr.bf16.mxu0 0
  %125 = vmatpush1.bf16.msra.mxu0 %v67
  %126 = vmatprep.subr.bf16.mxu0 0
  %127 = vmatpush1.bf16.msra.mxu0 %v70
  %128 = vmatprep.subr.bf16.mxu0 0
  %129 = vmatpush1.bf16.msra.mxu0 0
  %130 = vmatprep.subr.bf16.mxu0 0
  %131 = vmatpush1.bf16.msra.mxu0 0
  %132 = vmatprep.subr.bf16.mxu0 0
  %133 = vmatpush1.bf16.msra.mxu0 0
  %134 = vmatprep.subr.bf16.mxu0 0
  %135 = vmatpush1.bf16.msra.mxu0 0
  %136 = vmatprep.subr.bf16.mxu0 0
  %137 = vmatpush1.bf16.msra.mxu0 0
  %138 = vmatprep.subr.bf16.mxu0 0
  %139 = vmatpush1.bf16.msra.mxu0 0
  %140 = vmatprep.subr.bf16.mxu0 0
  %141 = vmatpush1.bf16.msra.mxu0 0
  %142 = vmatprep.subr.bf16.mxu0 0
  %143 = vmatpush1.bf16.msra.mxu0 0
  %144 = vmatprep.subr.bf16.mxu0 0
  %145 = vmatpush1.bf16.msra.mxu0 0
  %146 = vmatprep.subr.bf16.mxu0 0
  %147 = vmatpush1.bf16.msra.mxu0 0
  %148 = vmatprep.subr.bf16.mxu0 0
  %149 = vmatpush1.bf16.msra.mxu0 0
  %150 = vmatprep.subr.bf16.mxu0 0
  %151 = vmatpush1.bf16.msra.mxu0 0
  %152 = vmatprep.subr.bf16.mxu0 0
  %153 = vmatpush1.bf16.msra.mxu0 0
  %154 = vmatprep.subr.bf16.mxu0 0
  %155 = vmatpush1.bf16.msra.mxu0 0
  %156 = vmatprep.mubr.bf16.mxu0 0
  %157 = vmatmul.mubr.bf16.gmra.mrb[0].mxu0 %v79
  %v158 = vpop.f32.mrb[0].mxu0
  %v159 = vadd.f32 %v41, %v158
  %v160 = vpop.f32.mrb[0].mxu0
  %v161 = vpop.f32.mrb[0].mxu0
  %v162 = vadd.f32 %v41, %v161
  %v163 = vpop.f32.mrb[0].mxu0
  %164 = vdwg.mxu0
  %165 = vst [vmem:[%s3] sm:$0xff] %v116
  %166 = vst [vmem:[%s3 + $0x8] sm:$0xff] %v118
  %167 = vst [vmem:[%s3 + $0x10] sm:$0xff] %v159
  %168 = vst [vmem:[%s3 + $0x18] sm:$0xf] %v120
  %169 = vst [vmem:[%s3 + $0x20] sm:$0xf] %v122
  %170 = vst [vmem:[%s3 + $0x28] sm:$0xf] %v162
  // Predicated region
  $region14: #{net_forward.4} parent=0 // pred_check
    _
  $region15: #{net_forward.4} parent=0 // pred_check_branch
    %172 = sbr.rel (0) target = $region17
  $region16: #{net_forward.4} parent=0 // pred_region
    _
  $region17: #{net_forward.4} parent=0 // pred_fallthru
    _
  // Predicated region
  $region18: #{net_forward.4} parent=0 // pred_check
    _
  $region19: #{net_forward.4} parent=0 // pred_check_branch
    %174 = sbr.rel (0) target = $region21
  $region20: #{net_forward.4} parent=0 // pred_region
    _
  $region21: #{net_forward.4} parent=0 // pred_fallthru
    _

// kernel: net_forward.6
$region0: #{net_forward.6}
  #allocation0 [shape = 'u32[]', space=smem, size = 0x4, offset = 0x4, fixed_abs, tag = 'smem constant byte address 0x4 - core index']
  #allocation1 [shape = 'u32[144,128]{1,0:T(1,128)}', space=vmem, size = 0x12000, scoped, tag = 'internal scratch']
  %s0 = inlined_call_operand.vmem [shape: f32[2,128,16], index: 0, kind: input, shape index: {}]
  %s1 = inlined_call_operand.vmem [shape: f32[2,32,1], index: 1, kind: input, shape index: {}]
  %s2 = inlined_call_operand.vmem [shape: bf16[32,128], index: 2, kind: input, shape index: {}]
  %s3 = inlined_call_operand.vmem [shape: bf16[2,32], index: 3, kind: input, shape index: {}]
  %s4 = inlined_call_operand.vmem [shape: f32[2,1], index: 4, kind: input, shape index: {}]
  %s5 = inlined_call_operand.vmem [shape: f32[2,2,128], index: 5, kind: output, shape index: {}]
  %s6 = sld [smem:[#allocation0]]
  $region53: #{net_forward.6} parent=0
    _
  %s8 = ssub.s32 1, %s6
  %s9 = scalar_select 0, %s8, %s6
  loop: start=0, step=1, limit=4
  $region2: #{net_forward.6} parent=0 // loop_pre_header
    _
  $region3: #{net_forward.6} parent=0 // loop_header
    %s11 = sphi 0, %s15
    %p12 = scmp.ge.s32.totalorder %s11, 4
    %s21 = sphi 0, %s23
    %s24 = sphi 0, %s21
    %s25 = sphi 0, %s24
    %s41 = sphi 0, %s25
    %s47 = sphi 0, %s49
    %s50 = sphi 0, %s47
    %s51 = sphi 0, %s50
    %s67 = sphi 0, %s51
    %s71 = sphi 0, %s71
    %s73 = sphi 0, %s71
    %s74 = sphi 0, %s73
    %s88 = sphi 0, %s74
    %s92 = sphi 0, %s92
    %s94 = sphi 0, %s92
    %s95 = sphi 0, %s94
    %s109 = sphi 0, %s95
    %s113 = sphi 0, %s113
    %s115 = sphi 0, %s113
    %s116 = sphi 0, %s115
    %s130 = sphi 0, %s116
    %s136 = sphi 0, %s138
    %s139 = sphi 0, %s136
    %s140 = sphi 0, %s139
    %s156 = sphi 0, %s140
  $region4: #{net_forward.6} parent=0 // loop_header_branch
    %14 = sbr.rel (%p12) target = $region8
  $region5: #{net_forward.6} parent=0 // loop_body
    %s16 = ssub.s32 %s11, 1
    %s17 = ssub.s32 %s11, 2
    %s18 = sadd.s32 %s11, 1
    %s19 = ssub.s32 %s11, %s18
    %p20 = scmp.eq.s32.totalorder %s19, 0
    %s22 = sadd.s32 %s21, 1
    %s23 = scalar_select %p20, %s21, %s22
    %p26 = pneg %p20
    %p27 = scmp.eq.s32.totalorder %s11, 1
    %p28 = por %p26, %p27
    %p29 = scmp.ne.s32.totalorder %s21, %s24
    %p30 = scmp.eq.s32.totalorder %s11, 0
    %p31 = por %p29, %p30
    %p32 = scmp.ne.s32.totalorder %s21, %s24
    %p33 = scmp.eq.s32.totalorder %s16, 1
    %p34 = por %p32, %p33
    %p35 = scmp.ne.s32.totalorder %s24, %s25
    %p36 = scmp.eq.s32.totalorder %s16, 0
    %p37 = por %p35, %p36
    %p38 = scmp.ne.s32.totalorder %s24, %s25
    %p39 = scmp.eq.s32.totalorder %s17, 1
    %p40 = por %p38, %p39
    %p42 = scmp.ne.s32.totalorder %s25, %s41
    %p43 = scmp.eq.s32.totalorder %s17, 0
    %p44 = por %p42, %p43
    %s45 = ssub.s32 %s11, %s18
    %p46 = scmp.eq.s32.totalorder %s45, 0
    %s48 = sadd.s32 %s47, 1
    %s49 = scalar_select %p46, %s47, %s48
    %p52 = pneg %p46
    %p53 = scmp.eq.s32.totalorder %s11, 1
    %p54 = por %p52, %p53
    %p55 = scmp.ne.s32.totalorder %s47, %s50
    %p56 = scmp.eq.s32.totalorder %s11, 0
    %p57 = por %p55, %p56
    %p58 = scmp.ne.s32.totalorder %s47, %s50
    %p59 = scmp.eq.s32.totalorder %s16, 1
    %p60 = por %p58, %p59
    %p61 = scmp.ne.s32.totalorder %s50, %s51
    %p62 = scmp.eq.s32.totalorder %s16, 0
    %p63 = por %p61, %p62
    %p64 = scmp.ne.s32.totalorder %s50, %s51
    %p65 = scmp.eq.s32.totalorder %s17, 1
    %p66 = por %p64, %p65
    %p68 = scmp.ne.s32.totalorder %s51, %s67
    %p69 = scmp.eq.s32.totalorder %s17, 0
    %p70 = por %p68, %p69
    %s72 = sadd.s32 %s71, 1
    %p75 = scmp.eq.s32.totalorder %s11, 1
    %p76 = scmp.ne.s32.totalorder %s71, %s73
    %p77 = scmp.eq.s32.totalorder %s11, 0
    %p78 = por %p76, %p77
    %p79 = scmp.ne.s32.totalorder %s71, %s73
    %p80 = scmp.eq.s32.totalorder %s16, 1
    %p81 = por %p79, %p80
    %p82 = scmp.ne.s32.totalorder %s73, %s74
    %p83 = scmp.eq.s32.totalorder %s16, 0
    %p84 = por %p82, %p83
    %p85 = scmp.ne.s32.totalorder %s73, %s74
    %p86 = scmp.eq.s32.totalorder %s17, 1
    %p87 = por %p85, %p86
    %p89 = scmp.ne.s32.totalorder %s74, %s88
    %p90 = scmp.eq.s32.totalorder %s17, 0
    %p91 = por %p89, %p90
    %s93 = sadd.s32 %s92, 1
    %p96 = scmp.eq.s32.totalorder %s11, 1
    %p97 = scmp.ne.s32.totalorder %s92, %s94
    %p98 = scmp.eq.s32.totalorder %s11, 0
    %p99 = por %p97, %p98
    %p100 = scmp.ne.s32.totalorder %s92, %s94
    %p101 = scmp.eq.s32.totalorder %s16, 1
    %p102 = por %p100, %p101
    %p103 = scmp.ne.s32.totalorder %s94, %s95
    %p104 = scmp.eq.s32.totalorder %s16, 0
    %p105 = por %p103, %p104
    %p106 = scmp.ne.s32.totalorder %s94, %s95
    %p107 = scmp.eq.s32.totalorder %s17, 1
    %p108 = por %p106, %p107
    %p110 = scmp.ne.s32.totalorder %s95, %s109
    %p111 = scmp.eq.s32.totalorder %s17, 0
    %p112 = por %p110, %p111
    %s114 = sadd.s32 %s113, 1
    %p117 = scmp.eq.s32.totalorder %s11, 1
    %p118 = scmp.ne.s32.totalorder %s113, %s115
    %p119 = scmp.eq.s32.totalorder %s11, 0
    %p120 = por %p118, %p119
    %p121 = scmp.ne.s32.totalorder %s113, %s115
    %p122 = scmp.eq.s32.totalorder %s16, 1
    %p123 = por %p121, %p122
    %p124 = scmp.ne.s32.totalorder %s115, %s116
    %p125 = scmp.eq.s32.totalorder %s16, 0
    %p126 = por %p124, %p125
    %p127 = scmp.ne.s32.totalorder %s115, %s116
    %p128 = scmp.eq.s32.totalorder %s17, 1
    %p129 = por %p127, %p128
    %p131 = scmp.ne.s32.totalorder %s116, %s130
    %p132 = scmp.eq.s32.totalorder %s17, 0
    %p133 = por %p131, %p132
    %s134 = ssub.s32 %s11, %s18
    %p135 = scmp.eq.s32.totalorder %s134, 0
    %s137 = sadd.s32 %s136, 1
    %s138 = scalar_select %p135, %s136, %s137
    %p141 = pneg %p135
    %p142 = scmp.eq.s32.totalorder %s11, 1
    %p143 = por %p141, %p142
    %p144 = scmp.ne.s32.totalorder %s136, %s139
    %p145 = scmp.eq.s32.totalorder %s11, 0
    %p146 = por %p144, %p145
    %p147 = scmp.ne.s32.totalorder %s136, %s139
    %p148 = scmp.eq.s32.totalorder %s16, 1
    %p149 = por %p147, %p148
    %p150 = scmp.ne.s32.totalorder %s139, %s140
    %p151 = scmp.eq.s32.totalorder %s16, 0
    %p152 = por %p150, %p151
    %p153 = scmp.ne.s32.totalorder %s139, %s140
    %p154 = scmp.eq.s32.totalorder %s17, 1
    %p155 = por %p153, %p154
    %p157 = scmp.ne.s32.totalorder %s140, %s156
    %p158 = scmp.eq.s32.totalorder %s17, 0
    %p159 = por %p157, %p158
    %p160 = scmp.le.s32.totalorder 1, %s11
    %p161 = scmp.lt.s32.totalorder %s11, 3
    %p162 = pnand %p160, %p161
    %p163 = pneg %p162
    // Predicated region
    $region9: #{net_forward.6} parent=5 // pred_check
      _
    $region10: #{net_forward.6} parent=5 // pred_check_branch
      %165 = sbr.rel (%p162) target = $region12
    $region11: #{net_forward.6} parent=5 // pred_region
      %s166 = ssub.s32 %s11, 1
      // Predicated region
      $region13: #{net_forward.6} parent=11 // pred_check
        %p167 = pneg %p84
      $region14: #{net_forward.6} parent=11 // pred_check_branch
        %169 = sbr.rel (%p167) target = $region16
      $region15: #{net_forward.6} parent=11 // pred_region
        _
      $region16: #{net_forward.6} parent=11 // pred_fallthru
        _
      // Predicated region
      $region17: #{net_forward.6} parent=11 // pred_check
        %p170 = pneg %p105
      $region18: #{net_forward.6} parent=11 // pred_check_branch
        %172 = sbr.rel (%p170) target = $region20
      $region19: #{net_forward.6} parent=11 // pred_region
        _
      $region20: #{net_forward.6} parent=11 // pred_fallthru
        _
      // Predicated region
      $region21: #{net_forward.6} parent=11 // pred_check
        %p173 = pneg %p126
      $region22: #{net_forward.6} parent=11 // pred_check_branch
        %175 = sbr.rel (%p173) target = $region24
      $region23: #{net_forward.6} parent=11 // pred_region
        _
      $region24: #{net_forward.6} parent=11 // pred_fallthru
        _
    $region12: #{net_forward.6} parent=5 // pred_fallthru
      _
    %p176 = scmp.lt.s32.totalorder %s11, 2
    // Predicated region
    $region25: #{net_forward.6} parent=5 // pred_check
      %p177 = pneg %p176
    $region26: #{net_forward.6} parent=5 // pred_check_branch
      %179 = sbr.rel (%p177) target = $region28
    $region27: #{net_forward.6} parent=5 // pred_region
      // Predicated region
      $region29: #{net_forward.6} parent=27 // pred_check
        %p180 = pneg %p31
      $region30: #{net_forward.6} parent=27 // pred_check_branch
        %182 = sbr.rel (%p180) target = $region32
      $region31: #{net_forward.6} parent=27 // pred_region
        %p183 = scmp.lt.s32.totalorder %s11, 1
        %s184 = scalar_select %p183, %s11, 1
        %s185 = smul.addr %s184, 16
        %s186 = smul.addr %s185, 8
        %s187 = scalar_lea.vmem %s0, %s186
      $region32: #{net_forward.6} parent=27 // pred_fallthru
        _
      // Predicated region
      $region33: #{net_forward.6} parent=27 // pred_check
        %p188 = pneg %p57
      $region34: #{net_forward.6} parent=27 // pred_check_branch
        %190 = sbr.rel (%p188) target = $region36
      $region35: #{net_forward.6} parent=27 // pred_region
        %p191 = scmp.lt.s32.totalorder %s11, 1
        %s192 = scalar_select %p191, %s11, 1
        %s193 = smul.addr %s192, 4
        %s194 = smul.addr %s193, 8
        %s195 = scalar_lea.vmem %s1, %s194
      $region36: #{net_forward.6} parent=27 // pred_fallthru
        _
    $region28: #{net_forward.6} parent=5 // pred_fallthru
      _
    %p196 = scmp.le.s32.totalorder 1, %s11
    %p197 = scmp.lt.s32.totalorder %s11, 3
    %p198 = pnand %p196, %p197
    %p199 = pneg %p198
    // Predicated region
    $region37: #{net_forward.6} parent=5 // pred_check
      _
    $region38: #{net_forward.6} parent=5 // pred_check_branch
      %201 = sbr.rel (%p198) target = $region40
    $region39: #{net_forward.6} parent=5 // pred_region
      %s202 = ssub.s32 %s11, 1
      %p203 = scmp.lt.s32.totalorder %s16, 1
      %s204 = scalar_select %p203, %s16, 1
      %s205 = smul.addr %s204, 16
      %s206 = smul.addr %s205, 8
      %s207 = scalar_lea.vmem %s0, %s206
      %p208 = pneg %p37
      %p209 = pneg %p34
      %p210 = scmp.lt.s32.totalorder %s16, 1
      %s211 = scalar_select %p210, %s16, 1
      %s212 = smul.addr %s211, 4
      %s213 = smul.addr %s212, 8
      %s214 = scalar_lea.vmem %s1, %s213
      %p215 = pneg %p63
      %p216 = pneg %p60
      %p217 = pneg %p84
      %p218 = pneg %p81
      %p219 = pneg %p105
      %p220 = pneg %p102
      %p221 = pneg %p126
      %p222 = pneg %p123
      %p223 = pneg %p152
      %p224 = pneg %p149
      %p225 = scmp.lt.s32.totalorder %s16, 1
      %s226 = scalar_select %p225, %s16, 1
      %s227 = smul.addr %s226, 2
      %s228 = scalar_lea.vmem %s5, %s227
      %p229 = scmp.lt.s32.totalorder %s16, 1
      %s230 = scalar_select %p229, %s16, 1
      %s231 = smul.addr %s230, 16
      %s232 = smul.addr %s231, 8
      %s233 = scalar_lea.vmem %s0, %s232
      %p234 = scmp.lt.s32.totalorder %s16, 1
      %s235 = scalar_select %p234, %s16, 1
      %s236 = smul.addr %s235, 4
      %s237 = smul.addr %s236, 8
      %s238 = scalar_lea.vmem %s1, %s237
      %p239 = scmp.lt.s32.totalorder %s16, 1
      %s240 = scalar_select %p239, %s16, 1
      %s241 = smul.addr %s240, 2
      %s242 = scalar_lea.vmem %s5, %s241
      %v244 = vld [vmem:[%s233] sm:$0xff]
      %v245 = vld [vmem:[%s233 + $0x8] sm:$0xff]
      %v246 = vld [vmem:[%s233 + $0x10] sm:$0xff]
      %v247 = vld [vmem:[%s233 + $0x18] sm:$0xff]
      %v248 = vld [vmem:[%s233 + $0x20] sm:$0xff]
      %v249 = vld [vmem:[%s233 + $0x28] sm:$0xff]
      %v250 = vld [vmem:[%s233 + $0x30] sm:$0xff]
      %v251 = vld [vmem:[%s233 + $0x38] sm:$0xff]
      %v252 = vld [vmem:[%s233 + $0x40] sm:$0xff]
      %v253 = vld [vmem:[%s233 + $0x48] sm:$0xff]
      %v254 = vld [vmem:[%s233 + $0x50] sm:$0xff]
      %v255 = vld [vmem:[%s233 + $0x58] sm:$0xff]
      %v256 = vld [vmem:[%s233 + $0x60] sm:$0xff]
      %v257 = vld [vmem:[%s233 + $0x68] sm:$0xff]
      %v258 = vld [vmem:[%s233 + $0x70] sm:$0xff]
      %v259 = vld [vmem:[%s233 + $0x78] sm:$0xff]
      %v260 = vmul.f32 %v244, %v244
      %v261 = vmul.f32 %v245, %v245
      %v262 = vmul.f32 %v246, %v246
      %v263 = vmul.f32 %v247, %v247
      %v264 = vmul.f32 %v248, %v248
      %v265 = vmul.f32 %v249, %v249
      %v266 = vmul.f32 %v250, %v250
      %v267 = vmul.f32 %v251, %v251
      %v268 = vmul.f32 %v252, %v252
      %v269 = vmul.f32 %v253, %v253
      %v270 = vmul.f32 %v254, %v254
      %v271 = vmul.f32 %v255, %v255
      %v272 = vmul.f32 %v256, %v256
      %v273 = vmul.f32 %v257, %v257
      %v274 = vmul.f32 %v258, %v258
      %v275 = vmul.f32 %v259, %v259
      %vm276 = vcmask 130048
      %v277 = vsel %vm276, %v260, 0.0
      %v278 = vsel %vm276, %v261, 0.0
      %v279 = vadd.f32 %v277, %v278
      %v280 = vsel %vm276, %v262, 0.0
      %v281 = vadd.f32 %v279, %v280
      %v282 = vsel %vm276, %v263, 0.0
      %v283 = vadd.f32 %v281, %v282
      %v284 = vsel %vm276, %v264, 0.0
      %v285 = vadd.f32 %v283, %v284
      %v286 = vsel %vm276, %v265, 0.0
      %v287 = vadd.f32 %v285, %v286
      %v288 = vsel %vm276, %v266, 0.0
      %v289 = vadd.f32 %v287, %v288
      %v290 = vsel %vm276, %v267, 0.0
      %v291 = vadd.f32 %v289, %v290
      %v292 = vsel %vm276, %v268, 0.0
      %v293 = vadd.f32 %v291, %v292
      %v294 = vsel %vm276, %v269, 0.0
      %v295 = vadd.f32 %v293, %v294
      %v296 = vsel %vm276, %v270, 0.0
      %v297 = vadd.f32 %v295, %v296
      %v298 = vsel %vm276, %v271, 0.0
      %v299 = vadd.f32 %v297, %v298
      %v300 = vsel %vm276, %v272, 0.0
      %v301 = vadd.f32 %v299, %v300
      %v302 = vsel %vm276, %v273, 0.0
      %v303 = vadd.f32 %v301, %v302
      %v304 = vsel %vm276, %v274, 0.0
      %v305 = vadd.f32 %v303, %v304
      %v306 = vsel %vm276, %v275, 0.0
      %v307 = vadd.f32 %v305, %v306
      %v308 = vrot.slane %v307, 4
      %v309 = vadd.f32 %v307, %v308
      %v310 = vrot.slane %v309, 2
      %v311 = vadd.f32 %v309, %v310
      %v312 = vrot.slane %v311, 1
      %v313 = vadd.f32 %v311, %v312
      %v314 = vrsqrt.pop %v313
      %v315 = vmul.f32 %v313, %v314
      %vm316 = vcmp.eq.f32.partialorder %v313, inf
      %v317 = vsel %vm316, %v313, %v315
      %vm318 = vcmp.eq.f32.partialorder %v313, 0.0
      %v319 = vand.u32 %v313, 2147483648
      %v320 = vsel %vm318, %v319, %v317
      %v321 = vadd.f32 %v320, 1e-12
      %v322 = vrcp.pop %v321
      %v323 = vmul.f32 %v244, %v322
      %v324 = vmul.f32 %v245, %v322
      %v325 = vmul.f32 %v246, %v322
      %v326 = vmul.f32 %v247, %v322
      %v327 = vmul.f32 %v248, %v322
      %v328 = vmul.f32 %v249, %v322
      %v329 = vmul.f32 %v250, %v322
      %v330 = vmul.f32 %v251, %v322
      %v331 = vmul.f32 %v252, %v322
      %v332 = vmul.f32 %v253, %v322
      %v333 = vmul.f32 %v254, %v322
      %v334 = vmul.f32 %v255, %v322
      %v335 = vmul.f32 %v256, %v322
      %v336 = vmul.f32 %v257, %v322
      %v337 = vmul.f32 %v258, %v322
      %v338 = vmul.f32 %v259, %v322
      %v339 = vpack.c.bf16 %v324, %v323
      %v340 = vpack.c.bf16 %v326, %v325
      %v341 = vpack.c.bf16 %v328, %v327
      %v342 = vpack.c.bf16 %v330, %v329
      %v343 = vpack.c.bf16 %v332, %v331
      %v344 = vpack.c.bf16 %v334, %v333
      %v345 = vpack.c.bf16 %v336, %v335
      %v346 = vpack.c.bf16 %v338, %v337
      %v347 = vld [vmem:[%s238] sm:$0xff]
      %v348 = vld [vmem:[%s238 + $0x8] sm:$0xff]
      %v349 = vld [vmem:[%s238 + $0x10] sm:$0xff]
      %v350 = vld [vmem:[%s238 + $0x18] sm:$0xff]
      %v351 = vld [vmem:[%s2] sm:$0xf]
      %v352 = vld [vmem:[%s2 + $0x4] sm:$0xf]
      %v353 = vld [vmem:[%s2 + $0x8] sm:$0xf]
      %v354 = vld [vmem:[%s2 + $0xc] sm:$0xf]
      %v359 = vunpack.c.l.b16 %v351
      %v360 = vunpack.c.l.b16 %v352
      %v361 = vunpack.c.l.b16 %v353
      %v362 = vunpack.c.l.b16 %v354
      %v363 = vpack.c.b16 %v360, %v359
      %v364 = vpack.c.b16 %v362, %v361
      %367 = vmatprep.subr.bf16.mxu0 0
      %368 = vmatpush1.bf16.msra.mxu0 %v339
      %369 = vmatprep.subr.bf16.mxu0 0
      %370 = vmatpush1.bf16.msra.mxu0 %v340
      %371 = vmatprep.subr.bf16.mxu0 0
      %372 = vmatpush1.bf16.msra.mxu0 %v341
      %373 = vmatprep.subr.bf16.mxu0 0
      %374 = vmatpush1.bf16.msra.mxu0 %v342
      %375 = vmatprep.subr.bf16.mxu0 0
      %376 = vmatpush1.bf16.msra.mxu0 %v343
      %377 = vmatprep.subr.bf16.mxu0 0
      %378 = vmatpush1.bf16.msra.mxu0 %v344
      %379 = vmatprep.subr.bf16.mxu0 0
      %380 = vmatpush1.bf16.msra.mxu0 %v345
      %381 = vmatprep.subr.bf16.mxu0 0
      %382 = vmatpush1.bf16.msra.mxu0 %v346
      %383 = vmatprep.subr.bf16.mxu0 0
      %384 = vmatpush1.bf16.msra.mxu0 0
      %385 = vmatprep.subr.bf16.mxu0 0
      %386 = vmatpush1.bf16.msra.mxu0 0
      %387 = vmatprep.subr.bf16.mxu0 0
      %388 = vmatpush1.bf16.msra.mxu0 0
      %389 = vmatprep.subr.bf16.mxu0 0
      %390 = vmatpush1.bf16.msra.mxu0 0
      %391 = vmatprep.subr.bf16.mxu0 0
      %392 = vmatpush1.bf16.msra.mxu0 0
      %393 = vmatprep.subr.bf16.mxu0 0
      %394 = vmatpush1.bf16.msra.mxu0 0
      %395 = vmatprep.subr.bf16.mxu0 0
      %396 = vmatpush1.bf16.msra.mxu0 0
      %397 = vmatprep.subr.bf16.mxu0 0
      %398 = vmatpush1.bf16.msra.mxu0 0
      %399 = vmatprep.mubr.bf16.mxu0 0
      %400 = vmatmul.mubr.bf16.gmra.mrb[0].mxu0 %v363
      %v401 = vpop.f32.mrb[0].mxu0
      %v402 = vadd.f32 0.0, %v401
      %v403 = vpop.f32.mrb[0].mxu0
      %v404 = vpop.f32.mrb[0].mxu0
      %v405 = vadd.f32 0.0, %v404
      %v406 = vpop.f32.mrb[0].mxu0
      %407 = vmatprep.mubr.bf16.mxu0 0
      %408 = vmatmul.mubr.bf16.gmra.mrb[0].mxu0 %v364
      %v409 = vpop.f32.mrb[0].mxu0
      %v410 = vadd.f32 0.0, %v409
      %v411 = vpop.f32.mrb[0].mxu0
      %v412 = vpop.f32.mrb[0].mxu0
      %v413 = vadd.f32 0.0, %v412
      %v414 = vpop.f32.mrb[0].mxu0
      %415 = vdwg.mxu0
      %417 = vset.pattern.permute.xlu0 0
      %418 = vperm.xlu0 %417, %v347
      %v419 = vpop.permute.xlu0 %418
      %422 = vset.pattern.permute.xlu0 0
      %423 = vperm.xlu0 %422, %v348
      %v424 = vpop.permute.xlu0 %423
      %427 = vset.pattern.permute.xlu0 0
      %428 = vperm.xlu0 %427, %v349
      %v429 = vpop.permute.xlu0 %428
      %432 = vset.pattern.permute.xlu0 0
      %433 = vperm.xlu0 %432, %v350
      %v434 = vpop.permute.xlu0 %433
      %v436 = vsub.f32 %v402, %v419
      %v437 = vsub.f32 %v405, %v424
      %v438 = vsub.f32 %v410, %v429
      %v439 = vsub.f32 %v413, %v434
      %v440 = vmul.f32 %v436, %v436
      %v441 = vmul.f32 %v437, %v437
      %v442 = vmul.f32 %v438, %v438
      %v443 = vmul.f32 %v439, %v439
      %v444 = vsub.f32 0.0, %v440
      %v445 = vsub.f32 0.0, %v441
      %v446 = vsub.f32 0.0, %v442
      %v447 = vsub.f32 0.0, %v443
      %v448 = vadd.f32 %v402, %v419
      %v449 = vadd.f32 %v405, %v424
      %v450 = vadd.f32 %v410, %v429
      %v451 = vadd.f32 %v413, %v434
      %v452 = vmax.f32 %v448, 0.0
      %v453 = vmax.f32 %v449, 0.0
      %v454 = vmax.f32 %v450, 0.0
      %v455 = vmax.f32 %v451, 0.0
      %v456 = vadd.f32 %v444, %v452
      %v457 = vadd.f32 %v445, %v453
      %v458 = vadd.f32 %v446, %v454
      %v459 = vadd.f32 %v447, %v455
      %v460 = vld [vmem:[%s3] sm:$0x1]
      %v461 = vpack.c.bf16 %v457, %v456
      %v462 = vpack.c.bf16 %v459, %v458
      %v463 = vld [vmem:[%s4] sm:$0x3]
      %465 = vset.pattern.permute.xlu0 0
      %466 = vperm.xlu0 %465, %v463
      %v467 = vpop.permute.xlu0 %466
      %vm469 = vcmask 261120
      %v471 = vsel %vm469, %v460, 0
      %473 = vmatprep.subr.bf16.mxu0 0
      %474 = vmatpush1.bf16.msra.mxu0 %v461
      %475 = vmatprep.subr.bf16.mxu0 0
      %476 = vmatpush1.bf16.msra.mxu0 %v462
      %477 = vmatprep.subr.bf16.mxu0 0
      %478 = vmatpush1.bf16.msra.mxu0 0
      %479 = vmatprep.subr.bf16.mxu0 0
      %480 = vmatpush1.bf16.msra.mxu0 0
      %481 = vmatprep.subr.bf16.mxu0 0
      %482 = vmatpush1.bf16.msra.mxu0 0
      %483 = vmatprep.subr.bf16.mxu0 0
      %484 = vmatpush1.bf16.msra.mxu0 0
      %485 = vmatprep.subr.bf16.mxu0 0
      %486 = vmatpush1.bf16.msra.mxu0 0
      %487 = vmatprep.subr.bf16.mxu0 0
      %488 = vmatpush1.bf16.msra.mxu0 0
      %489 = vmatprep.subr.bf16.mxu0 0
      %490 = vmatpush1.bf16.msra.mxu0 0
      %491 = vmatprep.subr.bf16.mxu0 0
      %492 = vmatpush1.bf16.msra.mxu0 0
      %493 = vmatprep.subr.bf16.mxu0 0
      %494 = vmatpush1.bf16.msra.mxu0 0
      %495 = vmatprep.subr.bf16.mxu0 0
      %496 = vmatpush1.bf16.msra.mxu0 0
      %497 = vmatprep.subr.bf16.mxu0 0
      %498 = vmatpush1.bf16.msra.mxu0 0
      %499 = vmatprep.subr.bf16.mxu0 0
      %500 = vmatpush1.bf16.msra.mxu0 0
      %501 = vmatprep.subr.bf16.mxu0 0
      %502 = vmatpush1.bf16.msra.mxu0 0
      %503 = vmatprep.subr.bf16.mxu0 0
      %504 = vmatpush1.bf16.msra.mxu0 0
      %505 = vmatprep.mubr.bf16.mxu0 0
      %506 = vmatmul.mubr.bf16.gmra.mrb[0].mxu0 %v471
      %v507 = vpop.f32.mrb[0].mxu0
      %v508 = vadd.f32 %v467, %v507
      %v509 = vpop.f32.mrb[0].mxu0
      %v510 = vpop.f32.mrb[0].mxu0
      %v511 = vpop.f32.mrb[0].mxu0
      %512 = vdwg.mxu0
      %vm513 = vcmask 123904
      %v514 = vsel %vm513, %v508, -inf
      %515 = vmax.xlane.f32.xlu0 %v514
      %v516 = vpop.xlane.xlu0 %515
      %v517 = vsub.f32 %v508, %v516
      %v518 = vmul.f32 %v517, 1.442695
      %v519 = vpow.pop %v518
      %v520 = vsel %vm513, %v519, 0.0
      %521 = vadd.xlane.f32.xlu0 %v520
      %v522 = vpop.xlane.xlu0 %521
      %v523 = vrcp.pop %v522
      %v524 = vmul.f32 %v519, %v523
      %v525 = vpack.c.bf16 %v524, %v524
      %v527 = vsel %vm276, %v525, 0
      %v530 = vsel %vm276, %v339, 0
      %v533 = vsel %vm276, %v340, 0
      %v536 = vsel %vm276, %v341, 0
      %v539 = vsel %vm276, %v342, 0
      %v542 = vsel %vm276, %v343, 0
      %v545 = vsel %vm276, %v344, 0
      %v548 = vsel %vm276, %v345, 0
      %v551 = vsel %vm276, %v346, 0
      %553 = vmatprep.subr.bf16.mxu0 0
      %554 = vmatpush1.bf16.xpose.msra.mxu0 %v530
      %555 = vmatprep.subr.bf16.mxu0 0
      %556 = vmatpush1.bf16.xpose.msra.mxu0 %v533
      %557 = vmatprep.subr.bf16.mxu0 0
      %558 = vmatpush1.bf16.xpose.msra.mxu0 %v536
      %559 = vmatprep.subr.bf16.mxu0 0
      %560 = vmatpush1.bf16.xpose.msra.mxu0 %v539
      %561 = vmatprep.subr.bf16.mxu0 0
      %562 = vmatpush1.bf16.xpose.msra.mxu0 %v542
      %563 = vmatprep.subr.bf16.mxu0 0
      %564 = vmatpush1.bf16.xpose.msra.mxu0 %v545
      %565 = vmatprep.subr.bf16.mxu0 0
      %566 = vmatpush1.bf16.xpose.msra.mxu0 %v548
      %567 = vmatprep.subr.bf16.mxu0 0
      %568 = vmatpush1.bf16.xpose.msra.mxu0 %v551
      %569 = vmatprep.subr.bf16.mxu0 0
      %570 = vmatpush1.bf16.xpose.msra.mxu0 0
      %571 = vmatprep.subr.bf16.mxu0 0
      %572 = vmatpush1.bf16.xpose.msra.mxu0 0
      %573 = vmatprep.subr.bf16.mxu0 0
      %574 = vmatpush1.bf16.xpose.msra.mxu0 0
      %575 = vmatprep.subr.bf16.mxu0 0
      %576 = vmatpush1.bf16.xpose.msra.mxu0 0
      %577 = vmatprep.subr.bf16.mxu0 0
      %578 = vmatpush1.bf16.xpose.msra.mxu0 0
      %579 = vmatprep.subr.bf16.mxu0 0
      %580 = vmatpush1.bf16.xpose.msra.mxu0 0
      %581 = vmatprep.subr.bf16.mxu0 0
      %582 = vmatpush1.bf16.xpose.msra.mxu0 0
      %583 = vmatprep.subr.bf16.mxu0 0
      %584 = vmatpush1.bf16.xpose.msra.mxu0 0
      %585 = vmatprep.mubr.bf16.mxu0 0
      %586 = vmatmul.mubr.bf16.gmra.mrb[0].mxu0 %v527
      %v587 = vpop.f32.mrb[0].mxu0
      %v588 = vadd.f32 0.0, %v587
      %v589 = vpop.f32.mrb[0].mxu0
      %v590 = vpop.f32.mrb[0].mxu0
      %v591 = vpop.f32.mrb[0].mxu0
      %592 = vdwg.mxu0
      %593 = vst [vmem:[%s242] sm:$0x3] %v588
      %p594 = scmp.lt.s32.totalorder %s16, 1
      %s595 = scalar_select %p594, %s16, 1
      %s596 = smul.addr %s595, 2
      %s597 = scalar_lea.vmem %s5, %s596
      // Predicated region
      $region41: #{net_forward.6} parent=39 // pred_check
        %p598 = pneg %p149
      $region42: #{net_forward.6} parent=39 // pred_check_branch
        %600 = sbr.rel (%p598) target = $region44
      $region43: #{net_forward.6} parent=39 // pred_region
        _
      $region44: #{net_forward.6} parent=39 // pred_fallthru
        _
    $region40: #{net_forward.6} parent=5 // pred_fallthru
      _
    %p601 = scmp.le.s32.totalorder 2, %s11
    // Predicated region
    $region45: #{net_forward.6} parent=5 // pred_check
      %p602 = pneg %p601
    $region46: #{net_forward.6} parent=5 // pred_check_branch
      %604 = sbr.rel (%p602) target = $region48
    $region47: #{net_forward.6} parent=5 // pred_region
      %s605 = ssub.s32 %s11, 2
      // Predicated region
      $region49: #{net_forward.6} parent=47 // pred_check
        %p606 = pneg %p155
      $region50: #{net_forward.6} parent=47 // pred_check_branch
        %608 = sbr.rel (%p606) target = $region52
      $region51: #{net_forward.6} parent=47 // pred_region
        %p609 = scmp.lt.s32.totalorder %s17, 1
        %s610 = scalar_select %p609, %s17, 1
        %s611 = smul.addr %s610, 2
        %s612 = scalar_lea.vmem %s5, %s611
      $region52: #{net_forward.6} parent=47 // pred_fallthru
        _
    $region48: #{net_forward.6} parent=5 // pred_fallthru
      _
  $region6: #{net_forward.6} parent=0 // loop_footer
    %s15 = sadd.s32 1, %s11
  $region7: #{net_forward.6} parent=0 // loop_footer_branch
    %10 = sbr.rel target = $region3
  $region8: #{net_forward.6} parent=0 // loop_exit
    _

// kernel: net_forward.7
$region0: #{net_forward.7}
  #allocation0 [shape = 'u32[]', space=smem, size = 0x4, offset = 0x4, fixed_abs, tag = 'smem constant byte address 0x4 - core index']
  #allocation1 [shape = 'u32[144,128]{1,0:T(1,128)}', space=vmem, size = 0x12000, scoped, tag = 'internal scratch']
  %s0 = inlined_call_operand.vmem [shape: f32[2,256], index: 0, kind: input, shape index: {}]
  %s1 = inlined_call_operand.vmem [shape: f32[2,128], index: 1, kind: input, shape index: {}]
  %s2 = inlined_call_operand.vmem [shape: f32[2,11], index: 2, kind: input, shape index: {}]
  %s3 = inlined_call_operand.vmem [shape: bf16[256,128], index: 3, kind: input, shape index: {}]
  %s4 = inlined_call_operand.vmem [shape: f32[1,128], index: 4, kind: input, shape index: {}, may-alias: {4,6,8,10}]
  %s5 = inlined_call_operand.vmem [shape: bf16[128,128], index: 5, kind: input, shape index: {}]
  %s6 = inlined_call_operand.vmem [shape: f32[1,128], index: 6, kind: input, shape index: {}, may-alias: {4,6,8,10}]
  %s7 = inlined_call_operand.vmem [shape: bf16[11,128], index: 7, kind: input, shape index: {}]
  %s8 = inlined_call_operand.vmem [shape: f32[1,128], index: 8, kind: input, shape index: {}, may-alias: {4,6,8,10}]
  %s9 = inlined_call_operand.vmem [shape: bf16[128,128], index: 9, kind: input, shape index: {}]
  %s10 = inlined_call_operand.vmem [shape: f32[1,128], index: 10, kind: input, shape index: {}, may-alias: {4,6,8,10}]
  %s11 = inlined_call_operand.hbm [shape: f32[2,128], index: 11, kind: output, shape index: {}]
  %s12 = sld [smem:[#allocation0]]
  $region54: #{net_forward.7} parent=0
    _
  %s14 = ssub.s32 1, %s12
  %s15 = scalar_select 0, %s14, %s12
  $region1: #{net_forward.7} parent=0
    #allocation2 [shape = 'u8[1024]{0}', space=vmem, size = 0x400, scoped, tag = 'output window, operand 0, single buffered']
    #allocation3 [shape = 's32[1]{0}', space=sflag, size = 0x4, scoped, tag = 'scoped memory for net_forward.7']
    %16 = vsyncpa [#allocation3], 0
    // Predicated region
    $region2: #{net_forward.7} parent=1 // pred_check
      _
    $region3: #{net_forward.7} parent=1 // pred_check_branch
      %18 = sbr.rel (0) target = $region5
    $region4: #{net_forward.7} parent=1 // pred_region
      _
    $region5: #{net_forward.7} parent=1 // pred_fallthru
      _
    // Predicated region
    $region6: #{net_forward.7} parent=1 // pred_check
      _
    $region7: #{net_forward.7} parent=1 // pred_check_branch
      %20 = sbr.rel (0) target = $region9
    $region8: #{net_forward.7} parent=1 // pred_region
      _
    $region9: #{net_forward.7} parent=1 // pred_fallthru
      _
    // Predicated region
    $region10: #{net_forward.7} parent=1 // pred_check
      _
    $region11: #{net_forward.7} parent=1 // pred_check_branch
      %22 = sbr.rel (0) target = $region13
    $region12: #{net_forward.7} parent=1 // pred_region
      _
    $region13: #{net_forward.7} parent=1 // pred_fallthru
      _
    // Predicated region
    $region14: #{net_forward.7} parent=1 // pred_check
      _
    $region15: #{net_forward.7} parent=1 // pred_check_branch
      %24 = sbr.rel (0) target = $region17
    $region16: #{net_forward.7} parent=1 // pred_region
      _
    $region17: #{net_forward.7} parent=1 // pred_fallthru
      _
    // Predicated region
    $region18: #{net_forward.7} parent=1 // pred_check
      _
    $region19: #{net_forward.7} parent=1 // pred_check_branch
      %26 = sbr.rel (0) target = $region21
    $region20: #{net_forward.7} parent=1 // pred_region
      _
    $region21: #{net_forward.7} parent=1 // pred_fallthru
      _
    // Predicated region
    $region22: #{net_forward.7} parent=1 // pred_check
      _
    $region23: #{net_forward.7} parent=1 // pred_check_branch
      %28 = sbr.rel (0) target = $region25
    $region24: #{net_forward.7} parent=1 // pred_region
      _
    $region25: #{net_forward.7} parent=1 // pred_fallthru
      _
    // Predicated region
    $region26: #{net_forward.7} parent=1 // pred_check
      _
    $region27: #{net_forward.7} parent=1 // pred_check_branch
      %30 = sbr.rel (0) target = $region29
    $region28: #{net_forward.7} parent=1 // pred_region
      _
    $region29: #{net_forward.7} parent=1 // pred_fallthru
      _
    // Predicated region
    $region30: #{net_forward.7} parent=1 // pred_check
      _
    $region31: #{net_forward.7} parent=1 // pred_check_branch
      %32 = sbr.rel (0) target = $region33
    $region32: #{net_forward.7} parent=1 // pred_region
      _
    $region33: #{net_forward.7} parent=1 // pred_fallthru
      _
    // Predicated region
    $region34: #{net_forward.7} parent=1 // pred_check
      _
    $region35: #{net_forward.7} parent=1 // pred_check_branch
      %34 = sbr.rel (0) target = $region37
    $region36: #{net_forward.7} parent=1 // pred_region
      _
    $region37: #{net_forward.7} parent=1 // pred_fallthru
      _
    // Predicated region
    $region38: #{net_forward.7} parent=1 // pred_check
      _
    $region39: #{net_forward.7} parent=1 // pred_check_branch
      %36 = sbr.rel (0) target = $region41
    $region40: #{net_forward.7} parent=1 // pred_region
      _
    $region41: #{net_forward.7} parent=1 // pred_fallthru
      _
    // Predicated region
    $region42: #{net_forward.7} parent=1 // pred_check
      _
    $region43: #{net_forward.7} parent=1 // pred_check_branch
      %38 = sbr.rel (0) target = $region45
    $region44: #{net_forward.7} parent=1 // pred_region
      _
    $region45: #{net_forward.7} parent=1 // pred_fallthru
      _
    %v40 = vld [vmem:[%s0] sm:$0xf]
    %v43 = vunpack.c.l.s4 1983009808
    %v44 = vunpack.c.0.s8 %v43
    %v45 = vlaneseq
    %v46 = vshrl.u32 %v45, 7
    %v47 = vsub.s32 %v44, %v46
    %v48 = vrot.slane %v40, %v47
    %v49 = vcombine.high %v48, %v48
    %v52 = vpack.c.bf16 %v48, %v48
    %v53 = vpack.c.bf16 %v49, %v49
    %v54 = vld [vmem:[%s3] sm:$0xf]
    %v55 = vld [vmem:[%s3 + $0x4] sm:$0xf]
    %v56 = vld [vmem:[%s3 + $0x8] sm:$0xf]
    %v57 = vld [vmem:[%s3 + $0xc] sm:$0xf]
    %v58 = vld [vmem:[%s3 + $0x10] sm:$0xf]
    %v59 = vld [vmem:[%s3 + $0x14] sm:$0xf]
    %v60 = vld [vmem:[%s3 + $0x18] sm:$0xf]
    %v61 = vld [vmem:[%s3 + $0x1c] sm:$0xf]
    %v62 = vld [vmem:[%s3 + $0x20] sm:$0xf]
    %v63 = vld [vmem:[%s3 + $0x24] sm:$0xf]
    %v64 = vld [vmem:[%s3 + $0x28] sm:$0xf]
    %v65 = vld [vmem:[%s3 + $0x2c] sm:$0xf]
    %v66 = vld [vmem:[%s3 + $0x30] sm:$0xf]
    %v67 = vld [vmem:[%s3 + $0x34] sm:$0xf]
    %v68 = vld [vmem:[%s3 + $0x38] sm:$0xf]
    %v69 = vld [vmem:[%s3 + $0x3c] sm:$0xf]
    %v70 = vld [vmem:[%s3 + $0x40] sm:$0xf]
    %v71 = vld [vmem:[%s3 + $0x44] sm:$0xf]
    %v72 = vld [vmem:[%s3 + $0x48] sm:$0xf]
    %v73 = vld [vmem:[%s3 + $0x4c] sm:$0xf]
    %v74 = vld [vmem:[%s3 + $0x50] sm:$0xf]
    %v75 = vld [vmem:[%s3 + $0x54] sm:$0xf]
    %v76 = vld [vmem:[%s3 + $0x58] sm:$0xf]
    %v77 = vld [vmem:[%s3 + $0x5c] sm:$0xf]
    %v78 = vld [vmem:[%s3 + $0x60] sm:$0xf]
    %v79 = vld [vmem:[%s3 + $0x64] sm:$0xf]
    %v80 = vld [vmem:[%s3 + $0x68] sm:$0xf]
    %v81 = vld [vmem:[%s3 + $0x6c] sm:$0xf]
    %v82 = vld [vmem:[%s3 + $0x70] sm:$0xf]
    %v83 = vld [vmem:[%s3 + $0x74] sm:$0xf]
    %v84 = vld [vmem:[%s3 + $0x78] sm:$0xf]
    %v85 = vld [vmem:[%s3 + $0x7c] sm:$0xf]
    %v86 = vld [vmem:[%s4] sm:$0x1]
    %v88 = vlaneseq
    %v89 = vshrl.u32 %v88, 7
    %v90 = vsub.s32 0, %v89
    %v91 = vrot.slane %v86, %v90
    %v125 = vunpack.c.l.b16 %v54
    %v126 = vunpack.c.l.b16 %v55
    %v127 = vunpack.c.l.b16 %v56
    %v128 = vunpack.c.l.b16 %v57
    %v129 = vunpack.c.l.b16 %v58
    %v130 = vunpack.c.l.b16 %v59
    %v131 = vunpack.c.l.b16 %v60
    %v132 = vunpack.c.l.b16 %v61
    %v133 = vunpack.c.l.b16 %v62
    %v134 = vunpack.c.l.b16 %v63
    %v135 = vunpack.c.l.b16 %v64
    %v136 = vunpack.c.l.b16 %v65
    %v137 = vunpack.c.l.b16 %v66
    %v138 = vunpack.c.l.b16 %v67
    %v139 = vunpack.c.l.b16 %v68
    %v140 = vunpack.c.l.b16 %v69
    %v141 = vunpack.c.l.b16 %v70
    %v142 = vunpack.c.l.b16 %v71
    %v143 = vunpack.c.l.b16 %v72
    %v144 = vunpack.c.l.b16 %v73
    %v145 = vunpack.c.l.b16 %v74
    %v146 = vunpack.c.l.b16 %v75
    %v147 = vunpack.c.l.b16 %v76
    %v148 = vunpack.c.l.b16 %v77
    %v149 = vunpack.c.l.b16 %v78
    %v150 = vunpack.c.l.b16 %v79
    %v151 = vunpack.c.l.b16 %v80
    %v152 = vunpack.c.l.b16 %v81
    %v153 = vunpack.c.l.b16 %v82
    %v154 = vunpack.c.l.b16 %v83
    %v155 = vunpack.c.l.b16 %v84
    %v156 = vunpack.c.l.b16 %v85
    %v157 = vpack.c.b16 %v126, %v125
    %v158 = vpack.c.b16 %v128, %v127
    %v159 = vpack.c.b16 %v130, %v129
    %v160 = vpack.c.b16 %v132, %v131
    %v161 = vpack.c.b16 %v134, %v133
    %v162 = vpack.c.b16 %v136, %v135
    %v163 = vpack.c.b16 %v138, %v137
    %v164 = vpack.c.b16 %v140, %v139
    %v165 = vpack.c.b16 %v142, %v141
    %v166 = vpack.c.b16 %v144, %v143
    %v167 = vpack.c.b16 %v146, %v145
    %v168 = vpack.c.b16 %v148, %v147
    %v169 = vpack.c.b16 %v150, %v149
    %v170 = vpack.c.b16 %v152, %v151
    %v171 = vpack.c.b16 %v154, %v153
    %v172 = vpack.c.b16 %v156, %v155
    %189 = vmatprep.subr.bf16.mxu0 0
    %190 = vmatpush1.bf16.msra.mxu0 %v157
    %191 = vmatprep.subr.bf16.mxu0 0
    %192 = vmatpush1.bf16.msra.mxu0 %v158
    %193 = vmatprep.subr.bf16.mxu0 0
    %194 = vmatpush1.bf16.msra.mxu0 %v159
    %195 = vmatprep.subr.bf16.mxu0 0
    %196 = vmatpush1.bf16.msra.mxu0 %v160
    %197 = vmatprep.subr.bf16.mxu0 0
    %198 = vmatpush1.bf16.msra.mxu0 %v161
    %199 = vmatprep.subr.bf16.mxu0 0
    %200 = vmatpush1.bf16.msra.mxu0 %v162
    %201 = vmatprep.subr.bf16.mxu0 0
    %202 = vmatpush1.bf16.msra.mxu0 %v163
    %203 = vmatprep.subr.bf16.mxu0 0
    %204 = vmatpush1.bf16.msra.mxu0 %v164
    %205 = vmatprep.subr.bf16.mxu0 0
    %206 = vmatpush1.bf16.msra.mxu0 %v165
    %207 = vmatprep.subr.bf16.mxu0 0
    %208 = vmatpush1.bf16.msra.mxu0 %v166
    %209 = vmatprep.subr.bf16.mxu0 0
    %210 = vmatpush1.bf16.msra.mxu0 %v167
    %211 = vmatprep.subr.bf16.mxu0 0
    %212 = vmatpush1.bf16.msra.mxu0 %v168
    %213 = vmatprep.subr.bf16.mxu0 0
    %214 = vmatpush1.bf16.msra.mxu0 %v169
    %215 = vmatprep.subr.bf16.mxu0 0
    %216 = vmatpush1.bf16.msra.mxu0 %v170
    %217 = vmatprep.subr.bf16.mxu0 0
    %218 = vmatpush1.bf16.msra.mxu0 %v171
    %219 = vmatprep.subr.bf16.mxu0 0
    %220 = vmatpush1.bf16.msra.mxu0 %v172
    %221 = vmatprep.mubr.bf16.mxu0 %v53
    %222 = vmatmul.mubr.bf16.gmra.mrb[0].mxu0 %v52
    %v223 = vpop.f32.mrb[0].mxu0
    %v224 = vadd.f32 %v91, %v223
    %v225 = vpop.f32.mrb[0].mxu0
    %v226 = vpop.f32.mrb[0].mxu0
    %v227 = vpop.f32.mrb[0].mxu0
    %228 = vdwg.mxu0
    %v229 = vld [vmem:[%s1] sm:$0x3]
    %v230 = vpack.c.bf16 %v229, %v229
    %v231 = vld [vmem:[%s5] sm:$0xf]
    %v232 = vld [vmem:[%s5 + $0x4] sm:$0xf]
    %v233 = vld [vmem:[%s5 + $0x8] sm:$0xf]
    %v234 = vld [vmem:[%s5 + $0xc] sm:$0xf]
    %v235 = vld [vmem:[%s5 + $0x10] sm:$0xf]
    %v236 = vld [vmem:[%s5 + $0x14] sm:$0xf]
    %v237 = vld [vmem:[%s5 + $0x18] sm:$0xf]
    %v238 = vld [vmem:[%s5 + $0x1c] sm:$0xf]
    %v239 = vld [vmem:[%s5 + $0x20] sm:$0xf]
    %v240 = vld [vmem:[%s5 + $0x24] sm:$0xf]
    %v241 = vld [vmem:[%s5 + $0x28] sm:$0xf]
    %v242 = vld [vmem:[%s5 + $0x2c] sm:$0xf]
    %v243 = vld [vmem:[%s5 + $0x30] sm:$0xf]
    %v244 = vld [vmem:[%s5 + $0x34] sm:$0xf]
    %v245 = vld [vmem:[%s5 + $0x38] sm:$0xf]
    %v246 = vld [vmem:[%s5 + $0x3c] sm:$0xf]
    %v247 = vld [vmem:[%s6] sm:$0x1]
    %v249 = vlaneseq
    %v250 = vshrl.u32 %v249, 7
    %v251 = vsub.s32 0, %v250
    %v252 = vrot.slane %v247, %v251
    %v270 = vunpack.c.l.b16 %v231
    %v271 = vunpack.c.l.b16 %v232
    %v272 = vunpack.c.l.b16 %v233
    %v273 = vunpack.c.l.b16 %v234
    %v274 = vunpack.c.l.b16 %v235
    %v275 = vunpack.c.l.b16 %v236
    %v276 = vunpack.c.l.b16 %v237
    %v277 = vunpack.c.l.b16 %v238
    %v278 = vunpack.c.l.b16 %v239
    %v279 = vunpack.c.l.b16 %v240
    %v280 = vunpack.c.l.b16 %v241
    %v281 = vunpack.c.l.b16 %v242
    %v282 = vunpack.c.l.b16 %v243
    %v283 = vunpack.c.l.b16 %v244
    %v284 = vunpack.c.l.b16 %v245
    %v285 = vunpack.c.l.b16 %v246
    %v286 = vpack.c.b16 %v271, %v270
    %v287 = vpack.c.b16 %v273, %v272
    %v288 = vpack.c.b16 %v275, %v274
    %v289 = vpack.c.b16 %v277, %v276
    %v290 = vpack.c.b16 %v279, %v278
    %v291 = vpack.c.b16 %v281, %v280
    %v292 = vpack.c.b16 %v283, %v282
    %v293 = vpack.c.b16 %v285, %v284
    %302 = vmatprep.subr.bf16.mxu0 0
    %303 = vmatpush1.bf16.msra.mxu0 %v286
    %304 = vmatprep.subr.bf16.mxu0 0
    %305 = vmatpush1.bf16.msra.mxu0 %v287
    %306 = vmatprep.subr.bf16.mxu0 0
    %307 = vmatpush1.bf16.msra.mxu0 %v288
    %308 = vmatprep.subr.bf16.mxu0 0
    %309 = vmatpush1.bf16.msra.mxu0 %v289
    %310 = vmatprep.subr.bf16.mxu0 0
    %311 = vmatpush1.bf16.msra.mxu0 %v290
    %312 = vmatprep.subr.bf16.mxu0 0
    %313 = vmatpush1.bf16.msra.mxu0 %v291
    %314 = vmatprep.subr.bf16.mxu0 0
    %315 = vmatpush1.bf16.msra.mxu0 %v292
    %316 = vmatprep.subr.bf16.mxu0 0
    %317 = vmatpush1.bf16.msra.mxu0 %v293
    %318 = vmatprep.subr.bf16.mxu0 0
    %319 = vmatpush1.bf16.msra.mxu0 0
    %320 = vmatprep.subr.bf16.mxu0 0
    %321 = vmatpush1.bf16.msra.mxu0 0
    %322 = vmatprep.subr.bf16.mxu0 0
    %323 = vmatpush1.bf16.msra.mxu0 0
    %324 = vmatprep.subr.bf16.mxu0 0
    %325 = vmatpush1.bf16.msra.mxu0 0
    %326 = vmatprep.subr.bf16.mxu0 0
    %327 = vmatpush1.bf16.msra.mxu0 0
    %328 = vmatprep.subr.bf16.mxu0 0
    %329 = vmatpush1.bf16.msra.mxu0 0
    %330 = vmatprep.subr.bf16.mxu0 0
    %331 = vmatpush1.bf16.msra.mxu0 0
    %332 = vmatprep.subr.bf16.mxu0 0
    %333 = vmatpush1.bf16.msra.mxu0 0
    %334 = vmatprep.mubr.bf16.mxu0 0
    %335 = vmatmul.mubr.bf16.gmra.mrb[0].mxu0 %v230
    %v336 = vpop.f32.mrb[0].mxu0
    %v337 = vadd.f32 %v252, %v336
    %v338 = vpop.f32.mrb[0].mxu0
    %v339 = vpop.f32.mrb[0].mxu0
    %v340 = vpop.f32.mrb[0].mxu0
    %341 = vdwg.mxu0
    %v342 = vsub.f32 %v224, %v337
    %v343 = vmul.f32 %v342, %v342
    %v344 = vsub.f32 0.0, %v343
    %v345 = vadd.f32 %v224, %v337
    %v346 = vmax.f32 %v345, 0.0
    %v347 = vadd.f32 %v344, %v346
    %v348 = vld [vmem:[%s2] sm:$0x3]
    %v349 = vpack.c.bf16 %v348, %v348
    %v350 = vld [vmem:[%s7] sm:$0xf]
    %v351 = vld [vmem:[%s7 + $0x4] sm:$0x3]
    %v352 = vld [vmem:[%s8] sm:$0x1]
    %v354 = vlaneseq
    %v355 = vshrl.u32 %v354, 7
    %v356 = vsub.s32 0, %v355
    %v357 = vrot.slane %v352, %v356
    %v361 = vunpack.c.l.b16 %v350
    %v362 = vunpack.c.l.b16 %v351
    %v363 = vpack.c.b16 %v362, %v361
    %vm364 = vcmask 89088
    %v366 = vsel %vm364, %v349, 0
    %vm368 = vcmask 1044480
    %vm369 = vcmask 1045504
    %v370 = vsel %vm368, 4294967295, 65535
    %v371 = vsel %vm369, %v370, 0
    %v373 = vand.u32 %v363, %v371
    %375 = vmatprep.subr.bf16.mxu0 0
    %376 = vmatpush1.bf16.msra.mxu0 %v373
    %377 = vmatprep.subr.bf16.mxu0 0
    %378 = vmatpush1.bf16.msra.mxu0 0
    %379 = vmatprep.subr.bf16.mxu0 0
    %380 = vmatpush1.bf16.msra.mxu0 0
    %381 = vmatprep.subr.bf16.mxu0 0
    %382 = vmatpush1.bf16.msra.mxu0 0
    %383 = vmatprep.subr.bf16.mxu0 0
    %384 = vmatpush1.bf16.msra.mxu0 0
    %385 = vmatprep.subr.bf16.mxu0 0
    %386 = vmatpush1.bf16.msra.mxu0 0
    %387 = vmatprep.subr.bf16.mxu0 0
    %388 = vmatpush1.bf16.msra.mxu0 0
    %389 = vmatprep.subr.bf16.mxu0 0
    %390 = vmatpush1.bf16.msra.mxu0 0
    %391 = vmatprep.subr.bf16.mxu0 0
    %392 = vmatpush1.bf16.msra.mxu0 0
    %393 = vmatprep.subr.bf16.mxu0 0
    %394 = vmatpush1.bf16.msra.mxu0 0
    %395 = vmatprep.subr.bf16.mxu0 0
    %396 = vmatpush1.bf16.msra.mxu0 0
    %397 = vmatprep.subr.bf16.mxu0 0
    %398 = vmatpush1.bf16.msra.mxu0 0
    %399 = vmatprep.subr.bf16.mxu0 0
    %400 = vmatpush1.bf16.msra.mxu0 0
    %401 = vmatprep.subr.bf16.mxu0 0
    %402 = vmatpush1.bf16.msra.mxu0 0
    %403 = vmatprep.subr.bf16.mxu0 0
    %404 = vmatpush1.bf16.msra.mxu0 0
    %405 = vmatprep.subr.bf16.mxu0 0
    %406 = vmatpush1.bf16.msra.mxu0 0
    %407 = vmatprep.mubr.bf16.mxu0 0
    %408 = vmatmul.mubr.bf16.gmra.mrb[0].mxu0 %v366
    %v409 = vpop.f32.mrb[0].mxu0
    %v410 = vadd.f32 %v357, %v409
    %v411 = vpop.f32.mrb[0].mxu0
    %v412 = vpop.f32.mrb[0].mxu0
    %v413 = vpop.f32.mrb[0].mxu0
    %414 = vdwg.mxu0
    %v415 = vmax.f32 %v410, 0.0
    %v416 = vadd.f32 %v347, %v415
    %v417 = vpack.c.bf16 %v416, %v416
    %v418 = vld [vmem:[%s9] sm:$0xf]
    %v419 = vld [vmem:[%s9 + $0x4] sm:$0xf]
    %v420 = vld [vmem:[%s9 + $0x8] sm:$0xf]
    %v421 = vld [vmem:[%s9 + $0xc] sm:$0xf]
    %v422 = vld [vmem:[%s9 + $0x10] sm:$0xf]
    %v423 = vld [vmem:[%s9 + $0x14] sm:$0xf]
    %v424 = vld [vmem:[%s9 + $0x18] sm:$0xf]
    %v425 = vld [vmem:[%s9 + $0x1c] sm:$0xf]
    %v426 = vld [vmem:[%s9 + $0x20] sm:$0xf]
    %v427 = vld [vmem:[%s9 + $0x24] sm:$0xf]
    %v428 = vld [vmem:[%s9 + $0x28] sm:$0xf]
    %v429 = vld [vmem:[%s9 + $0x2c] sm:$0xf]
    %v430 = vld [vmem:[%s9 + $0x30] sm:$0xf]
    %v431 = vld [vmem:[%s9 + $0x34] sm:$0xf]
    %v432 = vld [vmem:[%s9 + $0x38] sm:$0xf]
    %v433 = vld [vmem:[%s9 + $0x3c] sm:$0xf]
    %v434 = vld [vmem:[%s10] sm:$0x1]
    %v436 = vlaneseq
    %v437 = vshrl.u32 %v436, 7
    %v438 = vsub.s32 0, %v437
    %v439 = vrot.slane %v434, %v438
    %v457 = vunpack.c.l.b16 %v418
    %v458 = vunpack.c.l.b16 %v419
    %v459 = vunpack.c.l.b16 %v420
    %v460 = vunpack.c.l.b16 %v421
    %v461 = vunpack.c.l.b16 %v422
    %v462 = vunpack.c.l.b16 %v423
    %v463 = vunpack.c.l.b16 %v424
    %v464 = vunpack.c.l.b16 %v425
    %v465 = vunpack.c.l.b16 %v426
    %v466 = vunpack.c.l.b16 %v427
    %v467 = vunpack.c.l.b16 %v428
    %v468 = vunpack.c.l.b16 %v429
    %v469 = vunpack.c.l.b16 %v430
    %v470 = vunpack.c.l.b16 %v431
    %v471 = vunpack.c.l.b16 %v432
    %v472 = vunpack.c.l.b16 %v433
    %v473 = vpack.c.b16 %v458, %v457
    %v474 = vpack.c.b16 %v460, %v459
    %v475 = vpack.c.b16 %v462, %v461
    %v476 = vpack.c.b16 %v464, %v463
    %v477 = vpack.c.b16 %v466, %v465
    %v478 = vpack.c.b16 %v468, %v467
    %v479 = vpack.c.b16 %v470, %v469
    %v480 = vpack.c.b16 %v472, %v471
    %489 = vmatprep.subr.bf16.mxu0 0
    %490 = vmatpush1.bf16.msra.mxu0 %v473
    %491 = vmatprep.subr.bf16.mxu0 0
    %492 = vmatpush1.bf16.msra.mxu0 %v474
    %493 = vmatprep.subr.bf16.mxu0 0
    %494 = vmatpush1.bf16.msra.mxu0 %v475
    %495 = vmatprep.subr.bf16.mxu0 0
    %496 = vmatpush1.bf16.msra.mxu0 %v476
    %497 = vmatprep.subr.bf16.mxu0 0
    %498 = vmatpush1.bf16.msra.mxu0 %v477
    %499 = vmatprep.subr.bf16.mxu0 0
    %500 = vmatpush1.bf16.msra.mxu0 %v478
    %501 = vmatprep.subr.bf16.mxu0 0
    %502 = vmatpush1.bf16.msra.mxu0 %v479
    %503 = vmatprep.subr.bf16.mxu0 0
    %504 = vmatpush1.bf16.msra.mxu0 %v480
    %505 = vmatprep.subr.bf16.mxu0 0
    %506 = vmatpush1.bf16.msra.mxu0 0
    %507 = vmatprep.subr.bf16.mxu0 0
    %508 = vmatpush1.bf16.msra.mxu0 0
    %509 = vmatprep.subr.bf16.mxu0 0
    %510 = vmatpush1.bf16.msra.mxu0 0
    %511 = vmatprep.subr.bf16.mxu0 0
    %512 = vmatpush1.bf16.msra.mxu0 0
    %513 = vmatprep.subr.bf16.mxu0 0
    %514 = vmatpush1.bf16.msra.mxu0 0
    %515 = vmatprep.subr.bf16.mxu0 0
    %516 = vmatpush1.bf16.msra.mxu0 0
    %517 = vmatprep.subr.bf16.mxu0 0
    %518 = vmatpush1.bf16.msra.mxu0 0
    %519 = vmatprep.subr.bf16.mxu0 0
    %520 = vmatpush1.bf16.msra.mxu0 0
    %521 = vmatprep.mubr.bf16.mxu0 0
    %522 = vmatmul.mubr.bf16.gmra.mrb[0].mxu0 %v417
    %v523 = vpop.f32.mrb[0].mxu0
    %v524 = vadd.f32 %v439, %v523
    %v525 = vpop.f32.mrb[0].mxu0
    %v526 = vpop.f32.mrb[0].mxu0
    %v527 = vpop.f32.mrb[0].mxu0
    %528 = vdwg.mxu0
    %529 = vst [vmem:[#allocation2] sm:$0x3] %v524
    // Predicated region
    $region46: #{net_forward.7} parent=1 // pred_check
      _
    $region47: #{net_forward.7} parent=1 // pred_check_branch
      %531 = sbr.rel (0) target = $region49
    $region48: #{net_forward.7} parent=1 // pred_region
      %s533 = ssub.s32 32, 32
      %534 = vsyncadd [#allocation3], %s533
      %s536 = sshll.u32 [#allocation2], 4
      %s537 = int_to_ptr.vmem [resolvable:$true] %s536
      %539 = dma.vmem_to_hbm [thread:$0]  %s537, 32, %s11, [#allocation3]
    $region49: #{net_forward.7} parent=1 // pred_fallthru
      _
    // Predicated region
    $region50: #{net_forward.7} parent=1 // pred_check
      _
    $region51: #{net_forward.7} parent=1 // pred_check_branch
      %541 = sbr.rel (0) target = $region53
    $region52: #{net_forward.7} parent=1 // pred_region
      %542 = dma.done [#allocation3], 32
    $region53: #{net_forward.7} parent=1 // pred_fallthru
      _
    %543 = vsyncpa [#allocation3], 1

// kernel: net_forward.5
$region0: #{net_forward.5}
  #allocation0 [shape = 'u32[]', space=smem, size = 0x4, offset = 0x4, fixed_abs, tag = 'smem constant byte address 0x4 - core index']
  #allocation1 [shape = 'u32[144,128]{1,0:T(1,128)}', space=vmem, size = 0x12000, scoped, tag = 'internal scratch']
  %s0 = inlined_call_operand.vmem [shape: f32[8,2,384], index: 0, kind: input, shape index: {}]
  %s1 = inlined_call_operand.vmem [shape: bf16[128,384], index: 1, kind: input, shape index: {}]
  %s2 = inlined_call_operand.vmem [shape: f32[1,384], index: 2, kind: input, shape index: {}]
  %s3 = inlined_call_operand.vmem [shape: s32[2,1], index: 3, kind: input, shape index: {}]
  %s4 = inlined_call_operand.vmem [shape: f32[2,128], index: 4, kind: output, shape index: {}]
  %s5 = sld [smem:[#allocation0]]
  $region53: #{net_forward.5} parent=0
    _
  %s7 = ssub.s32 1, %s5
  %s8 = scalar_select 0, %s7, %s5
  loop: start=0, step=1, limit=4
  $region2: #{net_forward.5} parent=0 // loop_pre_header
    _
  $region3: #{net_forward.5} parent=0 // loop_header
    %s10 = sphi 0, %s14
    %p11 = scmp.ge.s32.totalorder %s10, 4
    %s17 = sphi 0, %s29
    %s18 = sphi 0, %s25
    %s19 = sphi 0, %s17
    %s20 = sphi 0, %s18
    %s21 = sphi 0, %s19
    %s22 = sphi 0, %s20
    %s34 = sphi 0, %s36
    %s37 = sphi 0, %s34
    %s38 = sphi 0, %s37
    %s54 = sphi 0, %s38
    %s58 = sphi 0, %s58
    %s60 = sphi 0, %s58
    %s61 = sphi 0, %s60
    %s75 = sphi 0, %s61
    %s79 = sphi 0, %s79
    %s81 = sphi 0, %s79
    %s82 = sphi 0, %s81
    %s96 = sphi 0, %s82
    %s102 = sphi 0, %s104
    %s105 = sphi 0, %s102
    %s106 = sphi 0, %s105
    %s122 = sphi 0, %s106
    %s128 = sphi 0, %s130
    %s131 = sphi 0, %s128
    %s132 = sphi 0, %s131
    %s148 = sphi 0, %s132
  $region4: #{net_forward.5} parent=0 // loop_header_branch
    %13 = sbr.rel (%p11) target = $region8
  $region5: #{net_forward.5} parent=0 // loop_body
    %s15 = ssub.s32 %s10, 1
    %s16 = ssub.s32 %s10, 2
    %s23 = sadd.s32 1, %s18
    %p24 = scmp.ge.s32.totalorder %s23, 2
    %s25 = scalar_select %p24, 0, %s23
    %s26 = sadd.s32 1, %s17
    %s27 = scalar_select %p24, %s26, %s17
    %p28 = scmp.ge.s32.totalorder %s27, 1
    %s29 = scalar_select %p28, 0, %s27
    %s30 = ssub.s32 %s18, %s25
    %s31 = ssub.s32 %s17, %s29
    %s32 = sor.u32 %s30, %s31
    %p33 = scmp.eq.s32.totalorder %s32, 0
    %s35 = sadd.s32 %s34, 1
    %s36 = scalar_select %p33, %s34, %s35
    %p39 = pneg %p33
    %p40 = scmp.eq.s32.totalorder %s10, 1
    %p41 = por %p39, %p40
    %p42 = scmp.ne.s32.totalorder %s34, %s37
    %p43 = scmp.eq.s32.totalorder %s10, 0
    %p44 = por %p42, %p43
    %p45 = scmp.ne.s32.totalorder %s34, %s37
    %p46 = scmp.eq.s32.totalorder %s15, 1
    %p47 = por %p45, %p46
    %p48 = scmp.ne.s32.totalorder %s37, %s38
    %p49 = scmp.eq.s32.totalorder %s15, 0
    %p50 = por %p48, %p49
    %p51 = scmp.ne.s32.totalorder %s37, %s38
    %p52 = scmp.eq.s32.totalorder %s16, 1
    %p53 = por %p51, %p52
    %p55 = scmp.ne.s32.totalorder %s38, %s54
    %p56 = scmp.eq.s32.totalorder %s16, 0
    %p57 = por %p55, %p56
    %s59 = sadd.s32 %s58, 1
    %p62 = scmp.eq.s32.totalorder %s10, 1
    %p63 = scmp.ne.s32.totalorder %s58, %s60
    %p64 = scmp.eq.s32.totalorder %s10, 0
    %p65 = por %p63, %p64
    %p66 = scmp.ne.s32.totalorder %s58, %s60
    %p67 = scmp.eq.s32.totalorder %s15, 1
    %p68 = por %p66, %p67
    %p69 = scmp.ne.s32.totalorder %s60, %s61
    %p70 = scmp.eq.s32.totalorder %s15, 0
    %p71 = por %p69, %p70
    %p72 = scmp.ne.s32.totalorder %s60, %s61
    %p73 = scmp.eq.s32.totalorder %s16, 1
    %p74 = por %p72, %p73
    %p76 = scmp.ne.s32.totalorder %s61, %s75
    %p77 = scmp.eq.s32.totalorder %s16, 0
    %p78 = por %p76, %p77
    %s80 = sadd.s32 %s79, 1
    %p83 = scmp.eq.s32.totalorder %s10, 1
    %p84 = scmp.ne.s32.totalorder %s79, %s81
    %p85 = scmp.eq.s32.totalorder %s10, 0
    %p86 = por %p84, %p85
    %p87 = scmp.ne.s32.totalorder %s79, %s81
    %p88 = scmp.eq.s32.totalorder %s15, 1
    %p89 = por %p87, %p88
    %p90 = scmp.ne.s32.totalorder %s81, %s82
    %p91 = scmp.eq.s32.totalorder %s15, 0
    %p92 = por %p90, %p91
    %p93 = scmp.ne.s32.totalorder %s81, %s82
    %p94 = scmp.eq.s32.totalorder %s16, 1
    %p95 = por %p93, %p94
    %p97 = scmp.ne.s32.totalorder %s82, %s96
    %p98 = scmp.eq.s32.totalorder %s16, 0
    %p99 = por %p97, %p98
    %s100 = ssub.s32 %s17, %s29
    %p101 = scmp.eq.s32.totalorder %s100, 0
    %s103 = sadd.s32 %s102, 1
    %s104 = scalar_select %p101, %s102, %s103
    %p107 = pneg %p101
    %p108 = scmp.eq.s32.totalorder %s10, 1
    %p109 = por %p107, %p108
    %p110 = scmp.ne.s32.totalorder %s102, %s105
    %p111 = scmp.eq.s32.totalorder %s10, 0
    %p112 = por %p110, %p111
    %p113 = scmp.ne.s32.totalorder %s102, %s105
    %p114 = scmp.eq.s32.totalorder %s15, 1
    %p115 = por %p113, %p114
    %p116 = scmp.ne.s32.totalorder %s105, %s106
    %p117 = scmp.eq.s32.totalorder %s15, 0
    %p118 = por %p116, %p117
    %p119 = scmp.ne.s32.totalorder %s105, %s106
    %p120 = scmp.eq.s32.totalorder %s16, 1
    %p121 = por %p119, %p120
    %p123 = scmp.ne.s32.totalorder %s106, %s122
    %p124 = scmp.eq.s32.totalorder %s16, 0
    %p125 = por %p123, %p124
    %s126 = ssub.s32 %s17, %s29
    %p127 = scmp.eq.s32.totalorder %s126, 0
    %s129 = sadd.s32 %s128, 1
    %s130 = scalar_select %p127, %s128, %s129
    %p133 = pneg %p127
    %p134 = scmp.eq.s32.totalorder %s10, 1
    %p135 = por %p133, %p134
    %p136 = scmp.ne.s32.totalorder %s128, %s131
    %p137 = scmp.eq.s32.totalorder %s10, 0
    %p138 = por %p136, %p137
    %p139 = scmp.ne.s32.totalorder %s128, %s131
    %p140 = scmp.eq.s32.totalorder %s15, 1
    %p141 = por %p139, %p140
    %p142 = scmp.ne.s32.totalorder %s131, %s132
    %p143 = scmp.eq.s32.totalorder %s15, 0
    %p144 = por %p142, %p143
    %p145 = scmp.ne.s32.totalorder %s131, %s132
    %p146 = scmp.eq.s32.totalorder %s16, 1
    %p147 = por %p145, %p146
    %p149 = scmp.ne.s32.totalorder %s132, %s148
    %p150 = scmp.eq.s32.totalorder %s16, 0
    %p151 = por %p149, %p150
    %p152 = scmp.le.s32.totalorder 1, %s10
    %p153 = scmp.lt.s32.totalorder %s10, 3
    %p154 = pnand %p152, %p153
    %p155 = pneg %p154
    // Predicated region
    $region9: #{net_forward.5} parent=5 // pred_check
      _
    $region10: #{net_forward.5} parent=5 // pred_check_branch
      %157 = sbr.rel (%p154) target = $region12
    $region11: #{net_forward.5} parent=5 // pred_region
      %s158 = ssub.s32 %s10, 1
      // Predicated region
      $region13: #{net_forward.5} parent=11 // pred_check
        %p159 = pneg %p71
      $region14: #{net_forward.5} parent=11 // pred_check_branch
        %161 = sbr.rel (%p159) target = $region16
      $region15: #{net_forward.5} parent=11 // pred_region
        _
      $region16: #{net_forward.5} parent=11 // pred_fallthru
        _
      // Predicated region
      $region17: #{net_forward.5} parent=11 // pred_check
        %p162 = pneg %p92
      $region18: #{net_forward.5} parent=11 // pred_check_branch
        %164 = sbr.rel (%p162) target = $region20
      $region19: #{net_forward.5} parent=11 // pred_region
        _
      $region20: #{net_forward.5} parent=11 // pred_fallthru
        _
      // Predicated region
      $region21: #{net_forward.5} parent=11 // pred_check
        %p165 = pneg %p118
      $region22: #{net_forward.5} parent=11 // pred_check_branch
        %167 = sbr.rel (%p165) target = $region24
      $region23: #{net_forward.5} parent=11 // pred_region
        %p168 = scmp.lt.s32.totalorder %s19, 0
        %s169 = scalar_select %p168, %s19, 0
        %s170 = smul.addr %s169, 2
        %s171 = scalar_lea.vmem %s3, %s170
      $region24: #{net_forward.5} parent=11 // pred_fallthru
        _
    $region12: #{net_forward.5} parent=5 // pred_fallthru
      _
    %p172 = scmp.lt.s32.totalorder %s10, 2
    // Predicated region
    $region25: #{net_forward.5} parent=5 // pred_check
      %p173 = pneg %p172
    $region26: #{net_forward.5} parent=5 // pred_check_branch
      %175 = sbr.rel (%p173) target = $region28
    $region27: #{net_forward.5} parent=5 // pred_region
      // Predicated region
      $region29: #{net_forward.5} parent=27 // pred_check
        %p176 = pneg %p44
      $region30: #{net_forward.5} parent=27 // pred_check_branch
        %178 = sbr.rel (%p176) target = $region32
      $region31: #{net_forward.5} parent=27 // pred_region
        %s179 = smul.u32 4, %s18
        %p180 = scmp.lt.s32.totalorder %s179, 7
        %s181 = scalar_select %p180, %s179, 7
        %p182 = scmp.lt.s32.totalorder %s17, 0
        %s183 = scalar_select %p182, %s17, 0
        %s184 = smul.addr %s183, 3
        %s185 = smul.addr %s181, 3
        %s186 = sadd.s32 %s184, %s185
        %s187 = smul.addr %s186, 2
        %s188 = scalar_lea.vmem %s0, %s187
        %s189 = smul.u32 4, %s18
      $region32: #{net_forward.5} parent=27 // pred_fallthru
        _
    $region28: #{net_forward.5} parent=5 // pred_fallthru
      _
    %p190 = scmp.le.s32.totalorder 1, %s10
    %p191 = scmp.lt.s32.totalorder %s10, 3
    %p192 = pnand %p190, %p191
    %p193 = pneg %p192
    // Predicated region
    $region33: #{net_forward.5} parent=5 // pred_check
      _
    $region34: #{net_forward.5} parent=5 // pred_check_branch
      %195 = sbr.rel (%p192) target = $region36
    $region35: #{net_forward.5} parent=5 // pred_region
      %s196 = ssub.s32 %s10, 1
      %s197 = smul.u32 4, %s20
      %p198 = scmp.lt.s32.totalorder %s197, 7
      %s199 = scalar_select %p198, %s197, 7
      %p200 = scmp.lt.s32.totalorder %s19, 0
      %s201 = scalar_select %p200, %s19, 0
      %s202 = smul.addr %s201, 3
      %s203 = smul.addr %s199, 3
      %s204 = sadd.s32 %s202, %s203
      %s205 = smul.addr %s204, 2
      %s206 = scalar_lea.vmem %s0, %s205
      %p207 = pneg %p50
      %p208 = pneg %p47
      %p209 = pneg %p71
      %p210 = pneg %p68
      %p211 = pneg %p92
      %p212 = pneg %p89
      %p213 = scmp.lt.s32.totalorder %s19, 0
      %s214 = scalar_select %p213, %s19, 0
      %s215 = smul.addr %s214, 2
      %s216 = scalar_lea.vmem %s3, %s215
      %p217 = pneg %p118
      %p218 = pneg %p115
      %p219 = pneg %p144
      %p220 = pneg %p141
      %p221 = scmp.lt.s32.totalorder %s19, 0
      %s222 = scalar_select %p221, %s19, 0
      %s223 = smul.addr %s222, 2
      %s224 = scalar_lea.vmem %s4, %s223
      %s225 = smul.u32 4, %s20
      %p226 = scmp.lt.s32.totalorder %s225, 7
      %s227 = scalar_select %p226, %s225, 7
      %p228 = scmp.lt.s32.totalorder %s19, 0
      %s229 = scalar_select %p228, %s19, 0
      %s230 = smul.addr %s229, 3
      %s231 = smul.addr %s227, 3
      %s232 = sadd.s32 %s230, %s231
      %s233 = smul.addr %s232, 2
      %s234 = scalar_lea.vmem %s0, %s233
      %s235 = smul.u32 4, %s20
      %p236 = scmp.lt.s32.totalorder %s19, 0
      %s237 = scalar_select %p236, %s19, 0
      %s238 = smul.addr %s237, 2
      %s239 = scalar_lea.vmem %s3, %s238
      %p240 = scmp.lt.s32.totalorder %s19, 0
      %s241 = scalar_select %p240, %s19, 0
      %s242 = smul.addr %s241, 2
      %s243 = scalar_lea.vmem %s4, %s242
      %p245 = scmp.eq.s32.totalorder %s20, 0
      // Predicated region
      $region37: #{net_forward.5} parent=35 // pred_check
        %p246 = pneg %p245
      $region38: #{net_forward.5} parent=35 // pred_check_branch
        %248 = sbr.rel (%p246) target = $region40
      $region39: #{net_forward.5} parent=35 // pred_region
        %249 = vst [vmem:[%s243] sm:$0x3] 0.0
      $region40: #{net_forward.5} parent=35 // pred_fallthru
        _
      %v250 = vld [vmem:[%s239] sm:$0x3]
      %s251 = smul.u32 %s20, 4
      %v252 = vld [vmem:[%s243] sm:$0x3]
      %v253 = vld [vmem:[%s234] sm:$0x3f]
      %v254 = vpack.c.bf16 %v252, %v252
      %v255 = vld [vmem:[%s1] sm:$0xff]
      %v256 = vld [vmem:[%s1 + $0x8] sm:$0xf]
      %v257 = vld [vmem:[%s1 + $0xc] sm:$0xff]
      %v258 = vld [vmem:[%s1 + $0x14] sm:$0xf]
      %v259 = vld [vmem:[%s1 + $0x18] sm:$0xff]
      %v260 = vld [vmem:[%s1 + $0x20] sm:$0xf]
      %v261 = vld [vmem:[%s1 + $0x24] sm:$0xff]
      %v262 = vld [vmem:[%s1 + $0x2c] sm:$0xf]
      %v263 = vld [vmem:[%s1 + $0x30] sm:$0xff]
      %v264 = vld [vmem:[%s1 + $0x38] sm:$0xf]
      %v265 = vld [vmem:[%s1 + $0x3c] sm:$0xff]
      %v266 = vld [vmem:[%s1 + $0x44] sm:$0xf]
      %v267 = vld [vmem:[%s1 + $0x48] sm:$0xff]
      %v268 = vld [vmem:[%s1 + $0x50] sm:$0xf]
      %v269 = vld [vmem:[%s1 + $0x54] sm:$0xff]
      %v270 = vld [vmem:[%s1 + $0x5c] sm:$0xf]
      %v271 = vld [vmem:[%s1 + $0x60] sm:$0xff]
      %v272 = vld [vmem:[%s1 + $0x68] sm:$0xf]
      %v273 = vld [vmem:[%s1 + $0x6c] sm:$0xff]
      %v274 = vld [vmem:[%s1 + $0x74] sm:$0xf]
      %v275 = vld [vmem:[%s1 + $0x78] sm:$0xff]
      %v276 = vld [vmem:[%s1 + $0x80] sm:$0xf]
      %v277 = vld [vmem:[%s1 + $0x84] sm:$0xff]
      %v278 = vld [vmem:[%s1 + $0x8c] sm:$0xf]
      %v279 = vld [vmem:[%s1 + $0x90] sm:$0xff]
      %v280 = vld [vmem:[%s1 + $0x98] sm:$0xf]
      %v281 = vld [vmem:[%s1 + $0x9c] sm:$0xff]
      %v282 = vld [vmem:[%s1 + $0xa4] sm:$0xf]
      %v283 = vld [vmem:[%s1 + $0xa8] sm:$0xff]
      %v284 = vld [vmem:[%s1 + $0xb0] sm:$0xf]
      %v285 = vld [vmem:[%s1 + $0xb4] sm:$0xff]
      %v286 = vld [vmem:[%s1 + $0xbc] sm:$0xf]
      %v287 = vld [vmem:[%s2] sm:$0x7]
      %v289 = vlaneseq
      %v290 = vshrl.u32 %v289, 7
      %v291 = vsub.s32 0, %v290
      %v292 = vrot.slane %v287, %v291
      %v293 = vlaneseq
      %v294 = vshrl.u32 %v293, 7
      %v295 = vsub.s32 1, %v294
      %v296 = vrot.slane %v287, %v295
      %v297 = vlaneseq
      %v298 = vshrl.u32 %v297, 7
      %v299 = vsub.s32 2, %v298
      %v300 = vrot.slane %v287, %v299
      %v336 = vunpack.c.l.b16 %v255
      %v337 = vunpack.c.h.b16 %v255
      %v338 = vunpack.c.l.b16 %v256
      %v339 = vunpack.c.l.b16 %v257
      %v340 = vunpack.c.h.b16 %v257
      %v341 = vunpack.c.l.b16 %v258
      %v342 = vunpack.c.l.b16 %v259
      %v343 = vunpack.c.h.b16 %v259
      %v344 = vunpack.c.l.b16 %v260
      %v345 = vunpack.c.l.b16 %v261
      %v346 = vunpack.c.h.b16 %v261
      %v347 = vunpack.c.l.b16 %v262
      %v348 = vunpack.c.l.b16 %v263
      %v349 = vunpack.c.h.b16 %v263
      %v350 = vunpack.c.l.b16 %v264
      %v351 = vunpack.c.l.b16 %v265
      %v352 = vunpack.c.h.b16 %v265
      %v353 = vunpack.c.l.b16 %v266
      %v354 = vunpack.c.l.b16 %v267
      %v355 = vunpack.c.h.b16 %v267
      %v356 = vunpack.c.l.b16 %v268
      %v357 = vunpack.c.l.b16 %v269
      %v358 = vunpack.c.h.b16 %v269
      %v359 = vunpack.c.l.b16 %v270
      %v360 = vunpack.c.l.b16 %v271
      %v361 = vunpack.c.h.b16 %v271
      %v362 = vunpack.c.l.b16 %v272
      %v363 = vunpack.c.l.b16 %v273
      %v364 = vunpack.c.h.b16 %v273
      %v365 = vunpack.c.l.b16 %v274
      %v366 = vunpack.c.l.b16 %v275
      %v367 = vunpack.c.h.b16 %v275
      %v368 = vunpack.c.l.b16 %v276
      %v369 = vunpack.c.l.b16 %v277
      %v370 = vunpack.c.h.b16 %v277
      %v371 = vunpack.c.l.b16 %v278
      %v372 = vunpack.c.l.b16 %v279
      %v373 = vunpack.c.h.b16 %v279
      %v374 = vunpack.c.l.b16 %v280
      %v375 = vunpack.c.l.b16 %v281
      %v376 = vunpack.c.h.b16 %v281
      %v377 = vunpack.c.l.b16 %v282
      %v378 = vunpack.c.l.b16 %v283
      %v379 = vunpack.c.h.b16 %v283
      %v380 = vunpack.c.l.b16 %v284
      %v381 = vunpack.c.l.b16 %v285
      %v382 = vunpack.c.h.b16 %v285
      %v383 = vunpack.c.l.b16 %v286
      %v384 = vpack.c.b16 %v339, %v336
      %v385 = vpack.c.b16 %v340, %v337
      %v386 = vpack.c.b16 %v341, %v338
      %v387 = vpack.c.b16 %v345, %v342
      %v388 = vpack.c.b16 %v346, %v343
      %v389 = vpack.c.b16 %v347, %v344
      %v390 = vpack.c.b16 %v351, %v348
      %v391 = vpack.c.b16 %v352, %v349
      %v392 = vpack.c.b16 %v353, %v350
      %v393 = vpack.c.b16 %v357, %v354
      %v394 = vpack.c.b16 %v358, %v355
      %v395 = vpack.c.b16 %v359, %v356
      %v396 = vpack.c.b16 %v363, %v360
      %v397 = vpack.c.b16 %v364, %v361
      %v398 = vpack.c.b16 %v365, %v362
      %v399 = vpack.c.b16 %v369, %v366
      %v400 = vpack.c.b16 %v370, %v367
      %v401 = vpack.c.b16 %v371, %v368
      %v402 = vpack.c.b16 %v375, %v372
      %v403 = vpack.c.b16 %v376, %v373
      %v404 = vpack.c.b16 %v377, %v374
      %v405 = vpack.c.b16 %v381, %v378
      %v406 = vpack.c.b16 %v382, %v379
      %v407 = vpack.c.b16 %v383, %v380
      %432 = vmatprep.subr.bf16.mxu0 %v385
      %433 = vmatpush1.bf16.msra.mxu0 %v384
      %434 = vmatprep.subr.bf16.mxu0 %v388
      %435 = vmatpush1.bf16.msra.mxu0 %v387
      %436 = vmatprep.subr.bf16.mxu0 %v391
      %437 = vmatpush1.bf16.msra.mxu0 %v390
      %438 = vmatprep.subr.bf16.mxu0 %v394
      %439 = vmatpush1.bf16.msra.mxu0 %v393
      %440 = vmatprep.subr.bf16.mxu0 %v397
      %441 = vmatpush1.bf16.msra.mxu0 %v396
      %442 = vmatprep.subr.bf16.mxu0 %v400
      %443 = vmatpush1.bf16.msra.mxu0 %v399
      %444 = vmatprep.subr.bf16.mxu0 %v403
      %445 = vmatpush1.bf16.msra.mxu0 %v402
      %446 = vmatprep.subr.bf16.mxu0 %v406
      %447 = vmatpush1.bf16.msra.mxu0 %v405
      %448 = vmatprep.subr.bf16.mxu0 0
      %449 = vmatpush1.bf16.msra.mxu0 0
      %450 = vmatprep.subr.bf16.mxu0 0
      %451 = vmatpush1.bf16.msra.mxu0 0
      %452 = vmatprep.subr.bf16.mxu0 0
      %453 = vmatpush1.bf16.msra.mxu0 0
      %454 = vmatprep.subr.bf16.mxu0 0
      %455 = vmatpush1.bf16.msra.mxu0 0
      %456 = vmatprep.subr.bf16.mxu0 0
      %457 = vmatpush1.bf16.msra.mxu0 0
      %458 = vmatprep.subr.bf16.mxu0 0
      %459 = vmatpush1.bf16.msra.mxu0 0
      %460 = vmatprep.subr.bf16.mxu0 0
      %461 = vmatpush1.bf16.msra.mxu0 0
      %462 = vmatprep.subr.bf16.mxu0 0
      %463 = vmatpush1.bf16.msra.mxu0 0
      %464 = vmatprep.mubr.bf16.mxu0 0
      %465 = vmatmul.mubr.bf16.gmra.mrb[0].mxu0 %v254
      %v466 = vpop.f32.mrb[0].mxu0
      %v467 = vadd.f32 %v292, %v466
      %v468 = vpop.f32.mrb[0].mxu0
      %v469 = vadd.f32 %v296, %v468
      %v470 = vpop.f32.mrb[0].mxu0
      %v471 = vpop.f32.mrb[0].mxu0
      %472 = vdwg.mxu0
      %473 = vmatprep.subr.bf16.mxu0 0
      %474 = vmatpush1.bf16.msra.mxu0 %v386
      %475 = vmatprep.subr.bf16.mxu0 0
      %476 = vmatpush1.bf16.msra.mxu0 %v389
      %477 = vmatprep.subr.bf16.mxu0 0
      %478 = vmatpush1.bf16.msra.mxu0 %v392
      %479 = vmatprep.subr.bf16.mxu0 0
      %480 = vmatpush1.bf16.msra.mxu0 %v395
      %481 = vmatprep.subr.bf16.mxu0 0
      %482 = vmatpush1.bf16.msra.mxu0 %v398
      %483 = vmatprep.subr.bf16.mxu0 0
      %484 = vmatpush1.bf16.msra.mxu0 %v401
      %485 = vmatprep.subr.bf16.mxu0 0
      %486 = vmatpush1.bf16.msra.mxu0 %v404
      %487 = vmatprep.subr.bf16.mxu0 0
      %488 = vmatpush1.bf16.msra.mxu0 %v407
      %489 = vmatprep.subr.bf16.mxu0 0
      %490 = vmatpush1.bf16.msra.mxu0 0
      %491 = vmatprep.subr.bf16.mxu0 0
      %492 = vmatpush1.bf16.msra.mxu0 0
      %493 = vmatprep.subr.bf16.mxu0 0
      %494 = vmatpush1.bf16.msra.mxu0 0
      %495 = vmatprep.subr.bf16.mxu0 0
      %496 = vmatpush1.bf16.msra.mxu0 0
      %497 = vmatprep.subr.bf16.mxu0 0
      %498 = vmatpush1.bf16.msra.mxu0 0
      %499 = vmatprep.subr.bf16.mxu0 0
      %500 = vmatpush1.bf16.msra.mxu0 0
      %501 = vmatprep.subr.bf16.mxu0 0
      %502 = vmatpush1.bf16.msra.mxu0 0
      %503 = vmatprep.subr.bf16.mxu0 0
      %504 = vmatpush1.bf16.msra.mxu0 0
      %505 = vmatprep.mubr.bf16.mxu0 0
      %506 = vmatmul.mubr.bf16.gmra.mrb[0].mxu0 %v254
      %v507 = vpop.f32.mrb[0].mxu0
      %v508 = vadd.f32 %v300, %v507
      %v509 = vpop.f32.mrb[0].mxu0
      %v510 = vpop.f32.mrb[0].mxu0
      %v511 = vpop.f32.mrb[0].mxu0
      %512 = vdwg.mxu0
      %v513 = vadd.f32 %v253, %v467
      %v514 = vxor.u32 %v513, 2147483648
      %v515 = vmul.f32 %v514, 1.442695
      %v516 = vpow.pop %v515
      %v517 = vadd.f32 %v516, 1.0
      %v518 = vrcp.pop %v517
      %v519 = vmul.f32 1.0, %v518
      %v521 = vrot.slane %v253, 2
      %v523 = vadd.f32 %v521, %v469
      %v524 = vxor.u32 %v523, 2147483648
      %v525 = vmul.f32 %v524, 1.442695
      %v526 = vpow.pop %v525
      %v527 = vadd.f32 %v526, 1.0
      %v528 = vrcp.pop %v527
      %v529 = vmul.f32 1.0, %v528
      %v530 = vmul.f32 %v519, %v508
      %v531 = vrot.slane %v253, 4
      %v533 = vadd.f32 %v531, %v530
      %v534 = vtanh.pop %v533
      %v535 = vsub.f32 1.0, %v529
      %v536 = vmul.f32 %v535, %v534
      %v537 = vmul.f32 %v529, %v252
      %v538 = vadd.f32 %v536, %v537
      %v539 = vstv %s251
      %vm540 = vcmp.lt.s32.totalorder %v539, %v250
      %v541 = vsel %vm540, 1, 0
      %542 = vset.pattern.permute.xlu0 0
      %543 = vperm.xlu0 %542, %v541
      %v544 = vpop.permute.xlu0 %543
      %vm545 = vcmp.eq.s32.totalorder %v544, 1
      %v546 = vsel %vm545, %v538, %v252
      %s547 = scalar_lea.vmem %s234, 6
      %v548 = vld [vmem:[%s547] sm:$0x3f]
      %v549 = vpack.c.bf16 %v546, %v546
      %550 = vmatprep.subr.bf16.mxu0 %v385
      %551 = vmatpush1.bf16.msra.mxu0 %v384
      %552 = vmatprep.subr.bf16.mxu0 %v388
      %553 = vmatpush1.bf16.msra.mxu0 %v387
      %554 = vmatprep.subr.bf16.mxu0 %v391
      %555 = vmatpush1.bf16.msra.mxu0 %v390
      %556 = vmatprep.subr.bf16.mxu0 %v394
      %557 = vmatpush1.bf16.msra.mxu0 %v393
      %558 = vmatprep.subr.bf16.mxu0 %v397
      %559 = vmatpush1.bf16.msra.mxu0 %v396
      %560 = vmatprep.subr.bf16.mxu0 %v400
      %561 = vmatpush1.bf16.msra.mxu0 %v399
      %562 = vmatprep.subr.bf16.mxu0 %v403
      %563 = vmatpush1.bf16.msra.mxu0 %v402
      %564 = vmatprep.subr.bf16.mxu0 %v406
      %565 = vmatpush1.bf16.msra.mxu0 %v405
      %566 = vmatprep.subr.bf16.mxu0 0
      %567 = vmatpush1.bf16.msra.mxu0 0
      %568 = vmatprep.subr.bf16.mxu0 0
      %569 = vmatpush1.bf16.msra.mxu0 0
      %570 = vmatprep.subr.bf16.mxu0 0
      %571 = vmatpush1.bf16.msra.mxu0 0
      %572 = vmatprep.subr.bf16.mxu0 0
      %573 = vmatpush1.bf16.msra.mxu0 0
      %574 = vmatprep.subr.bf16.mxu0 0
      %575 = vmatpush1.bf16.msra.mxu0 0
      %576 = vmatprep.subr.bf16.mxu0 0
      %577 = vmatpush1.bf16.msra.mxu0 0
      %578 = vmatprep.subr.bf16.mxu0 0
      %579 = vmatpush1.bf16.msra.mxu0 0
      %580 = vmatprep.subr.bf16.mxu0 0
      %581 = vmatpush1.bf16.msra.mxu0 0
      %582 = vmatprep.mubr.bf16.mxu0 0
      %583 = vmatmul.mubr.bf16.gmra.mrb[0].mxu0 %v549
      %v584 = vpop.f32.mrb[0].mxu0
      %v585 = vadd.f32 %v292, %v584
      %v586 = vpop.f32.mrb[0].mxu0
      %v587 = vadd.f32 %v296, %v586
      %v588 = vpop.f32.mrb[0].mxu0
      %v589 = vpop.f32.mrb[0].mxu0
      %590 = vdwg.mxu0
      %591 = vmatprep.subr.bf16.mxu0 0
      %592 = vmatpush1.bf16.msra.mxu0 %v386
      %593 = vmatprep.subr.bf16.mxu0 0
      %594 = vmatpush1.bf16.msra.mxu0 %v389
      %595 = vmatprep.subr.bf16.mxu0 0
      %596 = vmatpush1.bf16.msra.mxu0 %v392
      %597 = vmatprep.subr.bf16.mxu0 0
      %598 = vmatpush1.bf16.msra.mxu0 %v395
      %599 = vmatprep.subr.bf16.mxu0 0
      %600 = vmatpush1.bf16.msra.mxu0 %v398
      %601 = vmatprep.subr.bf16.mxu0 0
      %602 = vmatpush1.bf16.msra.mxu0 %v401
      %603 = vmatprep.subr.bf16.mxu0 0
      %604 = vmatpush1.bf16.msra.mxu0 %v404
      %605 = vmatprep.subr.bf16.mxu0 0
      %606 = vmatpush1.bf16.msra.mxu0 %v407
      %607 = vmatprep.subr.bf16.mxu0 0
      %608 = vmatpush1.bf16.msra.mxu0 0
      %609 = vmatprep.subr.bf16.mxu0 0
      %610 = vmatpush1.bf16.msra.mxu0 0
      %611 = vmatprep.subr.bf16.mxu0 0
      %612 = vmatpush1.bf16.msra.mxu0 0
      %613 = vmatprep.subr.bf16.mxu0 0
      %614 = vmatpush1.bf16.msra.mxu0 0
      %615 = vmatprep.subr.bf16.mxu0 0
      %616 = vmatpush1.bf16.msra.mxu0 0
      %617 = vmatprep.subr.bf16.mxu0 0
      %618 = vmatpush1.bf16.msra.mxu0 0
      %619 = vmatprep.subr.bf16.mxu0 0
      %620 = vmatpush1.bf16.msra.mxu0 0
      %621 = vmatprep.subr.bf16.mxu0 0
      %622 = vmatpush1.bf16.msra.mxu0 0
      %623 = vmatprep.mubr.bf16.mxu0 0
      %624 = vmatmul.mubr.bf16.gmra.mrb[0].mxu0 %v549
      %v625 = vpop.f32.mrb[0].mxu0
      %v626 = vadd.f32 %v300, %v625
      %v627 = vpop.f32.mrb[0].mxu0
      %v628 = vpop.f32.mrb[0].mxu0
      %v629 = vpop.f32.mrb[0].mxu0
      %630 = vdwg.mxu0
      %v631 = vadd.f32 %v548, %v585
      %v632 = vxor.u32 %v631, 2147483648
      %v633 = vmul.f32 %v632, 1.442695
      %v634 = vpow.pop %v633
      %v635 = vadd.f32 %v634, 1.0
      %v636 = vrcp.pop %v635
      %v637 = vmul.f32 1.0, %v636
      %v639 = vrot.slane %v548, 2
      %v641 = vadd.f32 %v639, %v587
      %v642 = vxor.u32 %v641, 2147483648
      %v643 = vmul.f32 %v642, 1.442695
      %v644 = vpow.pop %v643
      %v645 = vadd.f32 %v644, 1.0
      %v646 = vrcp.pop %v645
      %v647 = vmul.f32 1.0, %v646
      %v648 = vmul.f32 %v637, %v626
      %v649 = vrot.slane %v548, 4
      %v651 = vadd.f32 %v649, %v648
      %v652 = vtanh.pop %v651
      %v653 = vsub.f32 1.0, %v647
      %v654 = vmul.f32 %v653, %v652
      %v655 = vmul.f32 %v647, %v546
      %v656 = vadd.f32 %v654, %v655
      %s657 = sadd.s32 %s251, 1
      %v658 = vstv %s657
      %vm659 = vcmp.lt.s32.totalorder %v658, %v250
      %v660 = vsel %vm659, 1, 0
      %661 = vset.pattern.permute.xlu0 0
      %662 = vperm.xlu0 %661, %v660
      %v663 = vpop.permute.xlu0 %662
      %vm664 = vcmp.eq.s32.totalorder %v663, 1
      %v665 = vsel %vm664, %v656, %v546
      %s666 = scalar_lea.vmem %s234, 12
      %v667 = vld [vmem:[%s666] sm:$0x3f]
      %v668 = vpack.c.bf16 %v665, %v665
      %669 = vmatprep.subr.bf16.mxu0 %v385
      %670 = vmatpush1.bf16.msra.mxu0 %v384
      %671 = vmatprep.subr.bf16.mxu0 %v388
      %672 = vmatpush1.bf16.msra.mxu0 %v387
      %673 = vmatprep.subr.bf16.mxu0 %v391
      %674 = vmatpush1.bf16.msra.mxu0 %v390
      %675 = vmatprep.subr.bf16.mxu0 %v394
      %676 = vmatpush1.bf16.msra.mxu0 %v393
      %677 = vmatprep.subr.bf16.mxu0 %v397
      %678 = vmatpush1.bf16.msra.mxu0 %v396
      %679 = vmatprep.subr.bf16.mxu0 %v400
      %680 = vmatpush1.bf16.msra.mxu0 %v399
      %681 = vmatprep.subr.bf16.mxu0 %v403
      %682 = vmatpush1.bf16.msra.mxu0 %v402
      %683 = vmatprep.subr.bf16.mxu0 %v406
      %684 = vmatpush1.bf16.msra.mxu0 %v405
      %685 = vmatprep.subr.bf16.mxu0 0
      %686 = vmatpush1.bf16.msra.mxu0 0
      %687 = vmatprep.subr.bf16.mxu0 0
      %688 = vmatpush1.bf16.msra.mxu0 0
      %689 = vmatprep.subr.bf16.mxu0 0
      %690 = vmatpush1.bf16.msra.mxu0 0
      %691 = vmatprep.subr.bf16.mxu0 0
      %692 = vmatpush1.bf16.msra.mxu0 0
      %693 = vmatprep.subr.bf16.mxu0 0
      %694 = vmatpush1.bf16.msra.mxu0 0
      %695 = vmatprep.subr.bf16.mxu0 0
      %696 = vmatpush1.bf16.msra.mxu0 0
      %697 = vmatprep.subr.bf16.mxu0 0
      %698 = vmatpush1.bf16.msra.mxu0 0
      %699 = vmatprep.subr.bf16.mxu0 0
      %700 = vmatpush1.bf16.msra.mxu0 0
      %701 = vmatprep.mubr.bf16.mxu0 0
      %702 = vmatmul.mubr.bf16.gmra.mrb[0].mxu0 %v668
      %v703 = vpop.f32.mrb[0].mxu0
      %v704 = vadd.f32 %v292, %v703
      %v705 = vpop.f32.mrb[0].mxu0
      %v706 = vadd.f32 %v296, %v705
      %v707 = vpop.f32.mrb[0].mxu0
      %v708 = vpop.f32.mrb[0].mxu0
      %709 = vdwg.mxu0
      %710 = vmatprep.subr.bf16.mxu0 0
      %711 = vmatpush1.bf16.msra.mxu0 %v386
      %712 = vmatprep.subr.bf16.mxu0 0
      %713 = vmatpush1.bf16.msra.mxu0 %v389
      %714 = vmatprep.subr.bf16.mxu0 0
      %715 = vmatpush1.bf16.msra.mxu0 %v392
      %716 = vmatprep.subr.bf16.mxu0 0
      %717 = vmatpush1.bf16.msra.mxu0 %v395
      %718 = vmatprep.subr.bf16.mxu0 0
      %719 = vmatpush1.bf16.msra.mxu0 %v398
      %720 = vmatprep.subr.bf16.mxu0 0
      %721 = vmatpush1.bf16.msra.mxu0 %v401
      %722 = vmatprep.subr.bf16.mxu0 0
      %723 = vmatpush1.bf16.msra.mxu0 %v404
      %724 = vmatprep.subr.bf16.mxu0 0
      %725 = vmatpush1.bf16.msra.mxu0 %v407
      %726 = vmatprep.subr.bf16.mxu0 0
      %727 = vmatpush1.bf16.msra.mxu0 0
      %728 = vmatprep.subr.bf16.mxu0 0
      %729 = vmatpush1.bf16.msra.mxu0 0
      %730 = vmatprep.subr.bf16.mxu0 0
      %731 = vmatpush1.bf16.msra.mxu0 0
      %732 = vmatprep.subr.bf16.mxu0 0
      %733 = vmatpush1.bf16.msra.mxu0 0
      %734 = vmatprep.subr.bf16.mxu0 0
      %735 = vmatpush1.bf16.msra.mxu0 0
      %736 = vmatprep.subr.bf16.mxu0 0
      %737 = vmatpush1.bf16.msra.mxu0 0
      %738 = vmatprep.subr.bf16.mxu0 0
      %739 = vmatpush1.bf16.msra.mxu0 0
      %740 = vmatprep.subr.bf16.mxu0 0
      %741 = vmatpush1.bf16.msra.mxu0 0
      %742 = vmatprep.mubr.bf16.mxu0 0
      %743 = vmatmul.mubr.bf16.gmra.mrb[0].mxu0 %v668
      %v744 = vpop.f32.mrb[0].mxu0
      %v745 = vadd.f32 %v300, %v744
      %v746 = vpop.f32.mrb[0].mxu0
      %v747 = vpop.f32.mrb[0].mxu0
      %v748 = vpop.f32.mrb[0].mxu0
      %749 = vdwg.mxu0
      %v750 = vadd.f32 %v667, %v704
      %v751 = vxor.u32 %v750, 2147483648
      %v752 = vmul.f32 %v751, 1.442695
      %v753 = vpow.pop %v752
      %v754 = vadd.f32 %v753, 1.0
      %v755 = vrcp.pop %v754
      %v756 = vmul.f32 1.0, %v755
      %v758 = vrot.slane %v667, 2
      %v760 = vadd.f32 %v758, %v706
      %v761 = vxor.u32 %v760, 2147483648
      %v762 = vmul.f32 %v761, 1.442695
      %v763 = vpow.pop %v762
      %v764 = vadd.f32 %v763, 1.0
      %v765 = vrcp.pop %v764
      %v766 = vmul.f32 1.0, %v765
      %v767 = vmul.f32 %v756, %v745
      %v768 = vrot.slane %v667, 4
      %v770 = vadd.f32 %v768, %v767
      %v771 = vtanh.pop %v770
      %v772 = vsub.f32 1.0, %v766
      %v773 = vmul.f32 %v772, %v771
      %v774 = vmul.f32 %v766, %v665
      %v775 = vadd.f32 %v773, %v774
      %s776 = sadd.s32 %s251, 2
      %v777 = vstv %s776
      %vm778 = vcmp.lt.s32.totalorder %v777, %v250
      %v779 = vsel %vm778, 1, 0
      %780 = vset.pattern.permute.xlu0 0
      %781 = vperm.xlu0 %780, %v779
      %v782 = vpop.permute.xlu0 %781
      %vm783 = vcmp.eq.s32.totalorder %v782, 1
      %v784 = vsel %vm783, %v775, %v665
      %s785 = scalar_lea.vmem %s234, 18
      %v786 = vld [vmem:[%s785] sm:$0x3f]
      %v787 = vpack.c.bf16 %v784, %v784
      %788 = vmatprep.subr.bf16.mxu0 %v385
      %789 = vmatpush1.bf16.msra.mxu0 %v384
      %790 = vmatprep.subr.bf16.mxu0 %v388
      %791 = vmatpush1.bf16.msra.mxu0 %v387
      %792 = vmatprep.subr.bf16.mxu0 %v391
      %793 = vmatpush1.bf16.msra.mxu0 %v390
      %794 = vmatprep.subr.bf16.mxu0 %v394
      %795 = vmatpush1.bf16.msra.mxu0 %v393
      %796 = vmatprep.subr.bf16.mxu0 %v397
      %797 = vmatpush1.bf16.msra.mxu0 %v396
      %798 = vmatprep.subr.bf16.mxu0 %v400
      %799 = vmatpush1.bf16.msra.mxu0 %v399
      %800 = vmatprep.subr.bf16.mxu0 %v403
      %801 = vmatpush1.bf16.msra.mxu0 %v402
      %802 = vmatprep.subr.bf16.mxu0 %v406
      %803 = vmatpush1.bf16.msra.mxu0 %v405
      %804 = vmatprep.subr.bf16.mxu0 0
      %805 = vmatpush1.bf16.msra.mxu0 0
      %806 = vmatprep.subr.bf16.mxu0 0
      %807 = vmatpush1.bf16.msra.mxu0 0
      %808 = vmatprep.subr.bf16.mxu0 0
      %809 = vmatpush1.bf16.msra.mxu0 0
      %810 = vmatprep.subr.bf16.mxu0 0
      %811 = vmatpush1.bf16.msra.mxu0 0
      %812 = vmatprep.subr.bf16.mxu0 0
      %813 = vmatpush1.bf16.msra.mxu0 0
      %814 = vmatprep.subr.bf16.mxu0 0
      %815 = vmatpush1.bf16.msra.mxu0 0
      %816 = vmatprep.subr.bf16.mxu0 0
      %817 = vmatpush1.bf16.msra.mxu0 0
      %818 = vmatprep.subr.bf16.mxu0 0
      %819 = vmatpush1.bf16.msra.mxu0 0
      %820 = vmatprep.mubr.bf16.mxu0 0
      %821 = vmatmul.mubr.bf16.gmra.mrb[0].mxu0 %v787
      %v822 = vpop.f32.mrb[0].mxu0
      %v823 = vadd.f32 %v292, %v822
      %v824 = vpop.f32.mrb[0].mxu0
      %v825 = vadd.f32 %v296, %v824
      %v826 = vpop.f32.mrb[0].mxu0
      %v827 = vpop.f32.mrb[0].mxu0
      %828 = vdwg.mxu0
      %829 = vmatprep.subr.bf16.mxu0 0
      %830 = vmatpush1.bf16.msra.mxu0 %v386
      %831 = vmatprep.subr.bf16.mxu0 0
      %832 = vmatpush1.bf16.msra.mxu0 %v389
      %833 = vmatprep.subr.bf16.mxu0 0
      %834 = vmatpush1.bf16.msra.mxu0 %v392
      %835 = vmatprep.subr.bf16.mxu0 0
      %836 = vmatpush1.bf16.msra.mxu0 %v395
      %837 = vmatprep.subr.bf16.mxu0 0
      %838 = vmatpush1.bf16.msra.mxu0 %v398
      %839 = vmatprep.subr.bf16.mxu0 0
      %840 = vmatpush1.bf16.msra.mxu0 %v401
      %841 = vmatprep.subr.bf16.mxu0 0
      %842 = vmatpush1.bf16.msra.mxu0 %v404
      %843 = vmatprep.subr.bf16.mxu0 0
      %844 = vmatpush1.bf16.msra.mxu0 %v407
      %845 = vmatprep.subr.bf16.mxu0 0
      %846 = vmatpush1.bf16.msra.mxu0 0
      %847 = vmatprep.subr.bf16.mxu0 0
      %848 = vmatpush1.bf16.msra.mxu0 0
      %849 = vmatprep.subr.bf16.mxu0 0
      %850 = vmatpush1.bf16.msra.mxu0 0
      %851 = vmatprep.subr.bf16.mxu0 0
      %852 = vmatpush1.bf16.msra.mxu0 0
      %853 = vmatprep.subr.bf16.mxu0 0
      %854 = vmatpush1.bf16.msra.mxu0 0
      %855 = vmatprep.subr.bf16.mxu0 0
      %856 = vmatpush1.bf16.msra.mxu0 0
      %857 = vmatprep.subr.bf16.mxu0 0
      %858 = vmatpush1.bf16.msra.mxu0 0
      %859 = vmatprep.subr.bf16.mxu0 0
      %860 = vmatpush1.bf16.msra.mxu0 0
      %861 = vmatprep.mubr.bf16.mxu0 0
      %862 = vmatmul.mubr.bf16.gmra.mrb[0].mxu0 %v787
      %v863 = vpop.f32.mrb[0].mxu0
      %v864 = vadd.f32 %v300, %v863
      %v865 = vpop.f32.mrb[0].mxu0
      %v866 = vpop.f32.mrb[0].mxu0
      %v867 = vpop.f32.mrb[0].mxu0
      %868 = vdwg.mxu0
      %v869 = vadd.f32 %v786, %v823
      %v870 = vxor.u32 %v869, 2147483648
      %v871 = vmul.f32 %v870, 1.442695
      %v872 = vpow.pop %v871
      %v873 = vadd.f32 %v872, 1.0
      %v874 = vrcp.pop %v873
      %v875 = vmul.f32 1.0, %v874
      %v877 = vrot.slane %v786, 2
      %v879 = vadd.f32 %v877, %v825
      %v880 = vxor.u32 %v879, 2147483648
      %v881 = vmul.f32 %v880, 1.442695
      %v882 = vpow.pop %v881
      %v883 = vadd.f32 %v882, 1.0
      %v884 = vrcp.pop %v883
      %v885 = vmul.f32 1.0, %v884
      %v886 = vmul.f32 %v875, %v864
      %v887 = vrot.slane %v786, 4
      %v889 = vadd.f32 %v887, %v886
      %v890 = vtanh.pop %v889
      %v891 = vsub.f32 1.0, %v885
      %v892 = vmul.f32 %v891, %v890
      %v893 = vmul.f32 %v885, %v784
      %v894 = vadd.f32 %v892, %v893
      %s895 = sadd.s32 %s251, 3
      %v896 = vstv %s895
      %vm897 = vcmp.lt.s32.totalorder %v896, %v250
      %v898 = vsel %vm897, 1, 0
      %899 = vset.pattern.permute.xlu0 0
      %900 = vperm.xlu0 %899, %v898
      %v901 = vpop.permute.xlu0 %900
      %vm902 = vcmp.eq.s32.totalorder %v901, 1
      %v903 = vsel %vm902, %v894, %v784
      %904 = vst [vmem:[%s243] sm:$0x3] %v903
      %p905 = scmp.lt.s32.totalorder %s19, 0
      %s906 = scalar_select %p905, %s19, 0
      %s907 = smul.addr %s906, 2
      %s908 = scalar_lea.vmem %s4, %s907
      // Predicated region
      $region41: #{net_forward.5} parent=35 // pred_check
        %p909 = pneg %p141
      $region42: #{net_forward.5} parent=35 // pred_check_branch
        %911 = sbr.rel (%p909) target = $region44
      $region43: #{net_forward.5} parent=35 // pred_region
        _
      $region44: #{net_forward.5} parent=35 // pred_fallthru
        _
      // Predicated region
      $region45: #{net_forward.5} parent=35 // pred_check
        %p912 = pneg %p141
      $region46: #{net_forward.5} parent=35 // pred_check_branch
        %914 = sbr.rel (%p912) target = $region48
      $region47: #{net_forward.5} parent=35 // pred_region
        %p915 = scmp.lt.s32.totalorder %s19, 0
        %s916 = scalar_select %p915, %s19, 0
        %s917 = smul.addr %s916, 2
        %s918 = scalar_lea.vmem %s4, %s917
      $region48: #{net_forward.5} parent=35 // pred_fallthru
        _
    $region36: #{net_forward.5} parent=5 // pred_fallthru
      _
    %p919 = scmp.le.s32.totalorder 2, %s10
    // Predicated region
    $region49: #{net_forward.5} parent=5 // pred_check
      %p920 = pneg %p919
    $region50: #{net_forward.5} parent=5 // pred_check_branch
      %922 = sbr.rel (%p920) target = $region52
    $region51: #{net_forward.5} parent=5 // pred_region
      %s923 = ssub.s32 %s10, 2
    $region52: #{net_forward.5} parent=5 // pred_fallthru
      _
  $region6: #{net_forward.5} parent=0 // loop_footer
    %s14 = sadd.s32 1, %s10
  $region7: #{net_forward.5} parent=0 // loop_footer_branch
    %9 = sbr.rel target = $region3
  $region8: #{net_forward.5} parent=0 // loop_exit
    _

</llo_original>
